<compile_context>
chip_gen: v7x
topology: tpu7x:2x2x1
jax: 0.10.0
libtpu: 0.0.40
codegen_flags: <defaults>
</compile_context>

<pallas_src>
import jax
import jax.numpy as jnp
from jax.experimental import pallas as pl
from jax.experimental.pallas import tpu as pltpu


_OFF = 2                    # left pad rows inside each sample's stride (>= conv halo of 2)
_K1, _K2, _K3 = 7, 5, 3     # conv kernel sizes


def _round_up(x, m):
    return -(-x // m) * m


# ---------------------------------------------------------------------------
# Pallas kernel: one grid step processes a tile of B samples, stacked along the
# matmul M dimension (R = B * S rows; per-sample stride S; pad rows masked to 0
# so they implement the conv zero padding between samples).
# ---------------------------------------------------------------------------
def _fcn_kernel(x_ref, mask_ref, pool_ref,
                w1_ref, b1_ref, w2_ref, b2_ref, w3_ref, b3_ref,
                wh_ref, bh_ref,
                out_ref):
    R = mask_ref.shape[0]
    mask = mask_ref[...]                                         # (R, 1) f32

    # ---- conv1 (+ folded BN1) + sigmoid: one matmul, K = 7*Cin_p -----------
    xcol = x_ref[0]                                              # (R, 7*Cin_p) bf16
    acc1 = jnp.dot(xcol, w1_ref[...],
                   preferred_element_type=jnp.float32) + b1_ref[...]
    a1 = jax.nn.sigmoid(acc1) * mask                             # (R, 128) f32

    # ---- conv2 (+ folded BN2) + sigmoid: 5 taps fused, one K=640 matmul ----
    z1 = jnp.zeros((2, a1.shape[1]), jnp.float32)
    a1e = jnp.concatenate([z1, a1, z1], axis=0)                  # (R+4, 128)
    lhs2 = jnp.concatenate(
        [a1e[k:k + R, :].astype(jnp.bfloat16) for k in range(_K2)], axis=1)  # (R, 640) bf16
    acc2 = jnp.dot(lhs2, w2_ref[...],
                   preferred_element_type=jnp.float32) + b2_ref[...]
    a2 = jax.nn.sigmoid(acc2) * mask                             # (R, 256) f32

    # ---- conv3 (+ folded BN3) + sigmoid: 3 taps fused, one K=768 matmul ----
    z2 = jnp.zeros((2, a2.shape[1]), jnp.float32)
    a2e = jnp.concatenate([z2, a2, z2], axis=0)                  # (R+4, 256)
    lhs3 = jnp.concatenate(
        [a2e[k:k + R, :].astype(jnp.bfloat16) for k in range(_K3)], axis=1)  # (R, 768) bf16
    acc3 = jnp.dot(lhs3, w3_ref[...],
                   preferred_element_type=jnp.float32) + b3_ref[...]
    a3 = jax.nn.sigmoid(acc3)                                    # (R, 128) f32

    # ---- AdaptiveAvgPool1d(1): segmented mean via pooling matmul (1/L3 folded in) --
    avg = jnp.dot(pool_ref[...], a3,
                  preferred_element_type=jnp.float32)            # (B, 128)

    # ---- folded linear1 @ linear2 head (lane-dense: classes padded to 128) --
    res = jnp.dot(avg.astype(jnp.bfloat16), wh_ref[...],
                  preferred_element_type=jnp.float32) + bh_ref[...]        # (B, Cpad)
    out_ref[0] = res.astype(out_ref.dtype)


# ---------------------------------------------------------------------------
# Wrapper: host-side im2col / layout prep + pallas_call plumbing.
# ---------------------------------------------------------------------------
def ordinary_transfer_fcn_forward(x_ncl, prep, num_classes, b_tile=None):
    """x_ncl: (N, C_in, L) float32 (PyTorch NCL).  Returns (N, num_classes) f32."""
    (w1col, b1, w2col, b2, w3col, b3, wh, bh) = prep
    N, c_in, L = x_ncl.shape
    cin_p = w1col.shape[0] // _K1
    ncls_pad = wh.shape[1]

    L1 = L + 2 * 4 - _K1 + 1           # conv1 out length  (= L + 2)
    L2 = L1                            # conv2 "same"      (= L + 2)
    L3 = L2 + 2 * 2 - _K3 + 1          # conv3 out length  (= L + 4)
    S = _round_up(_OFF + L3, 8)        # per-sample row stride (sublane aligned)

    if b_tile is None:
        b_tile = max(1, min(8, (N + 1) // 2))   # keep >= 2 grid steps (v7x megacore)
    G = -(-N // b_tile)
    R = b_tile * S

    # ---- host: im2col of conv1 input into the stacked, strided layout ------
    x = jnp.transpose(x_ncl, (0, 2, 1)).astype(jnp.float32)        # (N, L, C)
    x = jnp.pad(x, ((0, 0), (0, 0), (0, cin_p - c_in)))            # pad channels
    x = jnp.pad(x, ((0, 0), (4, 4), (0, 0)))                       # conv1 halo (pad=4)
    xcol = jnp.concatenate([x[:, k:k + L1, :] for k in range(_K1)], axis=-1)
    xcol = jnp.pad(xcol, ((0, G * b_tile - N), (0, 0), (0, 0)))    # pad batch
    buf = jnp.zeros((G * b_tile, S, _K1 * cin_p), jnp.float32)
    buf = buf.at[:, _OFF:_OFF + L1, :].set(xcol)
    xcol_stacked = buf.reshape(G, R, _K1 * cin_p).astype(jnp.bfloat16)  # bf16 in HBM

    # ---- host: row-validity mask and pre-scaled pooling matrix --------------
    r = jnp.arange(R)
    local = r % S
    samp = r // S
    mask = ((local >= _OFF) & (local < _OFF + L1)).astype(jnp.float32)[:, None]   # (R, 1)
    pool = (((samp[None, :] == jnp.arange(b_tile)[:, None])
             & (local >= _OFF)[None, :]
             & (local < _OFF + L3)[None, :]).astype(jnp.float32)
            / float(L3))                                                           # (B, R)

    grid_spec = pltpu.PrefetchScalarGridSpec(
        num_scalar_prefetch=0,
        grid=(G,),
        in_specs=[
            pl.BlockSpec((1, R, _K1 * cin_p), lambda n: (n, 0, 0)),   # input im2col (bf16)
            pl.BlockSpec((R, 1), lambda n: (0, 0)),                   # validity mask
            pl.BlockSpec((b_tile, R), lambda n: (0, 0)),              # pooling matrix
            pl.BlockSpec(w1col.shape, lambda n: (0, 0)),
            pl.BlockSpec(b1.shape, lambda n: (0, 0)),
            pl.BlockSpec(w2col.shape, lambda n: (0, 0)),
            pl.BlockSpec(b2.shape, lambda n: (0, 0)),
            pl.BlockSpec(w3col.shape, lambda n: (0, 0)),
            pl.BlockSpec(b3.shape, lambda n: (0, 0)),
            pl.BlockSpec(wh.shape, lambda n: (0, 0)),
            pl.BlockSpec(bh.shape, lambda n: (0, 0)),
        ],
        out_specs=pl.BlockSpec((1, b_tile, ncls_pad), lambda n: (n, 0, 0)),
    )

    out = pl.pallas_call(
        _fcn_kernel,
        out_shape=jax.ShapeDtypeStruct((G, b_tile, ncls_pad), jnp.float32),
        grid_spec=grid_spec,
        compiler_params=pltpu.CompilerParams(
            dimension_semantics=("parallel",)),
    )(xcol_stacked, mask, pool, w1col, b1, w2col, b2, w3col, b3, wh, bh)

    return out.reshape(G * b_tile, ncls_pad)[:N, :num_classes]


# ---------------------------------------------------------------------------
# Deterministic synthetic parameters (PyTorch layouts) + host-side folding.
# ---------------------------------------------------------------------------
def make_raw_params(key, c_in, num_classes):
    ks = jax.random.split(key, 16)

    def conv_w(k, cout, cin, ksz):
        return 0.1 * jax.random.normal(k, (cout, cin, ksz), jnp.float32)

    w1, b1 = conv_w(ks[0], 128, c_in, 7), 0.1 * jax.random.normal(ks[1], (128,))
    w2, b2 = conv_w(ks[2], 256, 128, 5), 0.1 * jax.random.normal(ks[3], (256,))
    w3, b3 = conv_w(ks[4], 128, 256, 3), 0.1 * jax.random.normal(ks[5], (128,))

    g1, be1 = 1.0 + 0.1 * jax.random.normal(ks[6], (128,)), 0.1 * jax.random.normal(ks[7], (128,))
    g2, be2 = 1.0 + 0.1 * jax.random.normal(ks[8], (256,)), 0.1 * jax.random.normal(ks[9], (256,))
    g3, be3 = 1.0 + 0.1 * jax.random.normal(ks[10], (128,)), 0.1 * jax.random.normal(ks[11], (128,))

    wl1 = 0.1 * jax.random.normal(ks[12], (128, 128), jnp.float32)        # (out, in)
    bl1 = 0.1 * jax.random.normal(ks[13], (128,), jnp.float32)
    wl2 = jax.random.normal(ks[14], (num_classes, 128), jnp.float32) * jnp.sqrt(2.0 / 128.0)
    bl2 = jnp.zeros((num_classes,), jnp.float32)                          # constant 0 init

    return (w1, b1, w2, b2, w3, b3, g1, be1, g2, be2, g3, be3, wl1, bl1, wl2, bl2)


def prepare_params(raw, c_in, num_classes):
    """Fold eval-mode BN + conv bias into conv weights, im2col-reshape conv weights,
    fold linear1+linear2, pad classes to a lane-dense 128, pre-cast to bf16."""
    eps = 1e-5
    (w1, b1c, w2, b2c, w3, b3c, g1, be1, g2, be2, g3, be3, wl1, bl1, wl2, bl2) = raw
    cin_p = max(8, _round_up(c_in, 8))

    def fold(w_pt, bc, gamma, beta, cin_pad=None):
        s = gamma / jnp.sqrt(1.0 + eps)            # eval-mode BN, fresh running stats
        w = jnp.transpose(w_pt, (2, 1, 0)) * s[None, None, :]     # (k, cin, cout)
        b = (s * bc + beta)[None, :]
        if cin_pad is not None and w.shape[1] < cin_pad:
            w = jnp.pad(w, ((0, 0), (0, cin_pad - w.shape[1]), (0, 0)))
        return w, b.astype(jnp.float32)

    w1f, b1 = fold(w1, b1c, g1, be1, cin_pad=cin_p)     # (7, cin_p, 128)
    w2f, b2 = fold(w2, b2c, g2, be2)                    # (5, 128, 256)
    w3f, b3 = fold(w3, b3c, g3, be3)                    # (3, 256, 128)

    w1col = w1f.reshape(_K1 * cin_p, 128).astype(jnp.bfloat16)
    w2col = w2f.reshape(_K2 * 128, 256).astype(jnp.bfloat16)
    w3col = w3f.reshape(_K3 * 256, 128).astype(jnp.bfloat16)

    ncls_pad = _round_up(num_classes, 128)
    wh = wl1.T @ wl2.T                                  # (128, num_classes) exact fold
    bh = bl1 @ wl2.T + bl2                              # (num_classes,)
    wh = jnp.pad(wh, ((0, 0), (0, ncls_pad - num_classes))).astype(jnp.bfloat16)
    bh = jnp.pad(bh, (0, ncls_pad - num_classes))[None, :].astype(jnp.float32)

    return (w1col, b1, w2col, b2, w3col, b3, wh, bh)


# ---------------------------------------------------------------------------
# Pure-JAX reference mirroring the kernel math (same folded / bf16 weights).
# ---------------------------------------------------------------------------
def reference_forward(x_ncl, prep, num_classes):
    (w1col, b1, w2col, b2, w3col, b3, wh, bh) = prep
    N, c_in, L = x_ncl.shape
    cin_p = w1col.shape[0] // _K1
    L1 = L + 2
    L2 = L1
    L3 = L2 + 2

    x = jnp.transpose(x_ncl, (0, 2, 1)).astype(jnp.float32)
    x = jnp.pad(x, ((0, 0), (0, 0), (0, cin_p - c_in)))
    x = jnp.pad(x, ((0, 0), (4, 4), (0, 0)))
    xcol = jnp.concatenate([x[:, k:k + L1, :] for k in range(_K1)],
                           axis=-1).astype(jnp.bfloat16)
    a1 = jax.nn.sigmoid(jnp.einsum('nlk,kc->nlc', xcol, w1col,
                                   preferred_element_type=jnp.float32) + b1)

    a1p = jnp.pad(a1, ((0, 0), (2, 2), (0, 0)))
    x2 = jnp.concatenate([a1p[:, k:k + L2, :] for k in range(_K2)],
                         axis=-1).astype(jnp.bfloat16)
    a2 = jax.nn.sigmoid(jnp.einsum('nlk,kc->nlc', x2, w2col,
                                   preferred_element_type=jnp.float32) + b2)

    a2p = jnp.pad(a2, ((0, 0), (2, 2), (0, 0)))
    x3 = jnp.concatenate([a2p[:, k:k + L3, :] for k in range(_K3)],
                         axis=-1).astype(jnp.bfloat16)
    a3 = jax.nn.sigmoid(jnp.einsum('nlk,kc->nlc', x3, w3col,
                                   preferred_element_type=jnp.float32) + b3)

    avg = jnp.mean(a3, axis=1)                                    # (N, 128)
    out = jnp.dot(avg.astype(jnp.bfloat16), wh,
                  preferred_element_type=jnp.float32) + bh
    return out[:, :num_classes]


if __name__ == "__main__":
    N, C_IN, L, NUM_CLASSES = 2, 4, 16, 8

    key = jax.random.PRNGKey(0)
    k_x, k_p = jax.random.split(key)
    x = jax.random.normal(k_x, (N, C_IN, L), jnp.float32)         # PyTorch NCL input
    raw = make_raw_params(k_p, C_IN, NUM_CLASSES)
    prep = prepare_params(raw, C_IN, NUM_CLASSES)

    out = ordinary_transfer_fcn_forward(x, prep, NUM_CLASSES)
    out = jax.block_until_ready(out)

    ref = reference_forward(x, prep, NUM_CLASSES)
    assert out.shape == (N, NUM_CLASSES)
    assert jnp.allclose(out, ref, atol=1e-2, rtol=1e-2), (out, ref)

    print("KERNEL_OK")
</pallas_src>

<mosaic_0001>
module attributes {stable_mosaic.version = 11 : i64} {
  func.func @_fcn_kernel(%arg0: i32, %arg1: memref<1x24x56xbf16, #tpu.memory_space<vmem>>, %arg2: memref<24x1xf32, #tpu.memory_space<vmem>>, %arg3: memref<1x24xf32, #tpu.memory_space<vmem>>, %arg4: memref<56x128xbf16, #tpu.memory_space<vmem>>, %arg5: memref<1x128xf32, #tpu.memory_space<vmem>>, %arg6: memref<640x256xbf16, #tpu.memory_space<vmem>>, %arg7: memref<1x256xf32, #tpu.memory_space<vmem>>, %arg8: memref<768x128xbf16, #tpu.memory_space<vmem>>, %arg9: memref<1x128xf32, #tpu.memory_space<vmem>>, %arg10: memref<128x128xbf16, #tpu.memory_space<vmem>>, %arg11: memref<1x128xf32, #tpu.memory_space<vmem>>, %arg12: memref<1x1x128xf32, #tpu.memory_space<vmem>>) attributes {dimension_semantics = [#tpu.dimension_semantics<parallel>], iteration_bounds = array<i64: 2>, scalar_prefetch = 0 : i64, scratch_operands = 0 : i64, tpu.core_type = #tpu.core_type<tc>, window_params = [{transform_indices = @transform_0, window_bounds = array<i64: 1, 24, 56>}, {pipeline_mode = #tpu.pipeline_mode<synchronous>, transform_indices = @transform_1, window_bounds = array<i64: 24, 1>}, {pipeline_mode = #tpu.pipeline_mode<synchronous>, transform_indices = @transform_2, window_bounds = array<i64: 1, 24>}, {pipeline_mode = #tpu.pipeline_mode<synchronous>, transform_indices = @transform_3, window_bounds = array<i64: 56, 128>}, {pipeline_mode = #tpu.pipeline_mode<synchronous>, transform_indices = @transform_4, window_bounds = array<i64: 1, 128>}, {pipeline_mode = #tpu.pipeline_mode<synchronous>, transform_indices = @transform_5, window_bounds = array<i64: 640, 256>}, {pipeline_mode = #tpu.pipeline_mode<synchronous>, transform_indices = @transform_6, window_bounds = array<i64: 1, 256>}, {pipeline_mode = #tpu.pipeline_mode<synchronous>, transform_indices = @transform_7, window_bounds = array<i64: 768, 128>}, {pipeline_mode = #tpu.pipeline_mode<synchronous>, transform_indices = @transform_8, window_bounds = array<i64: 1, 128>}, {pipeline_mode = #tpu.pipeline_mode<synchronous>, transform_indices = @transform_9, window_bounds = array<i64: 128, 128>}, {pipeline_mode = #tpu.pipeline_mode<synchronous>, transform_indices = @transform_10, window_bounds = array<i64: 1, 128>}, {transform_indices = @transform_11, window_bounds = array<i64: 1, 1, 128>}]} {
    %c0 = arith.constant 0 : index
    %c0_0 = arith.constant 0 : index
    %0 = vector.load %arg2[%c0, %c0_0] : memref<24x1xf32, #tpu.memory_space<vmem>>, vector<24x1xf32>
    %c0_1 = arith.constant 0 : index
    %c0_2 = arith.constant 0 : index
    %c0_3 = arith.constant 0 : index
    %1 = vector.load %arg1[%c0_1, %c0_2, %c0_3] : memref<1x24x56xbf16, #tpu.memory_space<vmem>>, vector<1x24x56xbf16>
    %2 = vector.shape_cast %1 : vector<1x24x56xbf16> to vector<24x56xbf16>
    %c0_4 = arith.constant 0 : index
    %c0_5 = arith.constant 0 : index
    %3 = vector.load %arg4[%c0_4, %c0_5] : memref<56x128xbf16, #tpu.memory_space<vmem>>, vector<56x128xbf16>
    %cst = arith.constant dense<0.000000e+00> : vector<24x128xf32>
    %4 = tpu.matmul %2, %3, %cst {dimension_numbers = #tpu.dot_dimension_numbers<[1], [0], [0], [1], [0, 0, 1, 1], [], []>} : vector<24x56xbf16>, vector<56x128xbf16>, vector<24x128xf32> -> vector<24x128xf32>
    %c0_6 = arith.constant 0 : index
    %c0_7 = arith.constant 0 : index
    %5 = vector.load %arg5[%c0_6, %c0_7] : memref<1x128xf32, #tpu.memory_space<vmem>>, vector<1x128xf32>
    %6 = vector.broadcast %5 : vector<1x128xf32> to vector<24x128xf32>
    %7 = arith.addf %4, %6 : vector<24x128xf32>
    %8 = arith.negf %7 : vector<24x128xf32>
    %9 = math.exp %8 : vector<24x128xf32>
    %cst_8 = arith.constant 1.000000e+00 : f32
    %10 = vector.broadcast %cst_8 : f32 to vector<24x128xf32>
    %11 = arith.addf %10, %9 : vector<24x128xf32>
    %12 = arith.divf %10, %11 : vector<24x128xf32>
    %13 = vector.broadcast %0 : vector<24x1xf32> to vector<24x128xf32>
    %14 = arith.mulf %12, %13 : vector<24x128xf32>
    %cst_9 = arith.constant 0.000000e+00 : f32
    %15 = vector.broadcast %cst_9 : f32 to vector<2x128xf32>
    %16 = tpu.concatenate %15, %14, %15 in 0 : vector<2x128xf32>, vector<24x128xf32>, vector<2x128xf32> -> vector<28x128xf32>
    %17 = vector.extract_strided_slice %16 {offsets = [0, 0], sizes = [24, 128], strides = [1, 1]} : vector<28x128xf32> to vector<24x128xf32>
    %18 = arith.truncf %17 : vector<24x128xf32> to vector<24x128xbf16>
    %19 = vector.extract_strided_slice %16 {offsets = [1, 0], sizes = [24, 128], strides = [1, 1]} : vector<28x128xf32> to vector<24x128xf32>
    %20 = arith.truncf %19 : vector<24x128xf32> to vector<24x128xbf16>
    %21 = vector.extract_strided_slice %16 {offsets = [2, 0], sizes = [24, 128], strides = [1, 1]} : vector<28x128xf32> to vector<24x128xf32>
    %22 = arith.truncf %21 : vector<24x128xf32> to vector<24x128xbf16>
    %23 = vector.extract_strided_slice %16 {offsets = [3, 0], sizes = [24, 128], strides = [1, 1]} : vector<28x128xf32> to vector<24x128xf32>
    %24 = arith.truncf %23 : vector<24x128xf32> to vector<24x128xbf16>
    %25 = vector.extract_strided_slice %16 {offsets = [4, 0], sizes = [24, 128], strides = [1, 1]} : vector<28x128xf32> to vector<24x128xf32>
    %26 = arith.truncf %25 : vector<24x128xf32> to vector<24x128xbf16>
    %27 = tpu.concatenate %18, %20, %22, %24, %26 in 1 : vector<24x128xbf16>, vector<24x128xbf16>, vector<24x128xbf16>, vector<24x128xbf16>, vector<24x128xbf16> -> vector<24x640xbf16>
    %c0_10 = arith.constant 0 : index
    %c0_11 = arith.constant 0 : index
    %28 = vector.load %arg6[%c0_10, %c0_11] : memref<640x256xbf16, #tpu.memory_space<vmem>>, vector<640x256xbf16>
    %cst_12 = arith.constant dense<0.000000e+00> : vector<24x256xf32>
    %29 = tpu.matmul %27, %28, %cst_12 {dimension_numbers = #tpu.dot_dimension_numbers<[1], [0], [0], [1], [0, 0, 1, 1], [], []>} : vector<24x640xbf16>, vector<640x256xbf16>, vector<24x256xf32> -> vector<24x256xf32>
    %c0_13 = arith.constant 0 : index
    %c0_14 = arith.constant 0 : index
    %30 = vector.load %arg7[%c0_13, %c0_14] : memref<1x256xf32, #tpu.memory_space<vmem>>, vector<1x256xf32>
    %31 = vector.broadcast %30 : vector<1x256xf32> to vector<24x256xf32>
    %32 = arith.addf %29, %31 : vector<24x256xf32>
    %33 = arith.negf %32 : vector<24x256xf32>
    %34 = math.exp %33 : vector<24x256xf32>
    %cst_15 = arith.constant 1.000000e+00 : f32
    %35 = vector.broadcast %cst_15 : f32 to vector<24x256xf32>
    %36 = arith.addf %35, %34 : vector<24x256xf32>
    %37 = arith.divf %35, %36 : vector<24x256xf32>
    %38 = vector.broadcast %0 : vector<24x1xf32> to vector<24x256xf32>
    %39 = arith.mulf %37, %38 : vector<24x256xf32>
    %cst_16 = arith.constant 0.000000e+00 : f32
    %40 = vector.broadcast %cst_16 : f32 to vector<2x256xf32>
    %41 = tpu.concatenate %40, %39, %40 in 0 : vector<2x256xf32>, vector<24x256xf32>, vector<2x256xf32> -> vector<28x256xf32>
    %42 = vector.extract_strided_slice %41 {offsets = [0, 0], sizes = [24, 256], strides = [1, 1]} : vector<28x256xf32> to vector<24x256xf32>
    %43 = arith.truncf %42 : vector<24x256xf32> to vector<24x256xbf16>
    %44 = vector.extract_strided_slice %41 {offsets = [1, 0], sizes = [24, 256], strides = [1, 1]} : vector<28x256xf32> to vector<24x256xf32>
    %45 = arith.truncf %44 : vector<24x256xf32> to vector<24x256xbf16>
    %46 = vector.extract_strided_slice %41 {offsets = [2, 0], sizes = [24, 256], strides = [1, 1]} : vector<28x256xf32> to vector<24x256xf32>
    %47 = arith.truncf %46 : vector<24x256xf32> to vector<24x256xbf16>
    %48 = tpu.concatenate %43, %45, %47 in 1 : vector<24x256xbf16>, vector<24x256xbf16>, vector<24x256xbf16> -> vector<24x768xbf16>
    %c0_17 = arith.constant 0 : index
    %c0_18 = arith.constant 0 : index
    %49 = vector.load %arg8[%c0_17, %c0_18] : memref<768x128xbf16, #tpu.memory_space<vmem>>, vector<768x128xbf16>
    %cst_19 = arith.constant dense<0.000000e+00> : vector<24x128xf32>
    %50 = tpu.matmul %48, %49, %cst_19 {dimension_numbers = #tpu.dot_dimension_numbers<[1], [0], [0], [1], [0, 0, 1, 1], [], []>} : vector<24x768xbf16>, vector<768x128xbf16>, vector<24x128xf32> -> vector<24x128xf32>
    %c0_20 = arith.constant 0 : index
    %c0_21 = arith.constant 0 : index
    %51 = vector.load %arg9[%c0_20, %c0_21] : memref<1x128xf32, #tpu.memory_space<vmem>>, vector<1x128xf32>
    %52 = vector.broadcast %51 : vector<1x128xf32> to vector<24x128xf32>
    %53 = arith.addf %50, %52 : vector<24x128xf32>
    %54 = arith.negf %53 : vector<24x128xf32>
    %55 = math.exp %54 : vector<24x128xf32>
    %cst_22 = arith.constant 1.000000e+00 : f32
    %56 = vector.broadcast %cst_22 : f32 to vector<24x128xf32>
    %57 = arith.addf %56, %55 : vector<24x128xf32>
    %58 = arith.divf %56, %57 : vector<24x128xf32>
    %c0_23 = arith.constant 0 : index
    %c0_24 = arith.constant 0 : index
    %59 = vector.load %arg3[%c0_23, %c0_24] : memref<1x24xf32, #tpu.memory_space<vmem>>, vector<1x24xf32>
    %cst_25 = arith.constant dense<0.000000e+00> : vector<1x128xf32>
    %60 = tpu.matmul %59, %58, %cst_25 {dimension_numbers = #tpu.dot_dimension_numbers<[1], [0], [0], [1], [0, 0, 1, 1], [], []>} : vector<1x24xf32>, vector<24x128xf32>, vector<1x128xf32> -> vector<1x128xf32>
    %61 = arith.truncf %60 : vector<1x128xf32> to vector<1x128xbf16>
    %c0_26 = arith.constant 0 : index
    %c0_27 = arith.constant 0 : index
    %62 = vector.load %arg10[%c0_26, %c0_27] : memref<128x128xbf16, #tpu.memory_space<vmem>>, vector<128x128xbf16>
    %cst_28 = arith.constant dense<0.000000e+00> : vector<1x128xf32>
    %63 = tpu.matmul %61, %62, %cst_28 {dimension_numbers = #tpu.dot_dimension_numbers<[1], [0], [0], [1], [0, 0, 1, 1], [], []>} : vector<1x128xbf16>, vector<128x128xbf16>, vector<1x128xf32> -> vector<1x128xf32>
    %c0_29 = arith.constant 0 : index
    %c0_30 = arith.constant 0 : index
    %64 = vector.load %arg11[%c0_29, %c0_30] : memref<1x128xf32, #tpu.memory_space<vmem>>, vector<1x128xf32>
    %65 = arith.addf %63, %64 : vector<1x128xf32>
    %c0_31 = arith.constant 0 : index
    %c0_32 = arith.constant 0 : index
    %c0_33 = arith.constant 0 : index
    %66 = vector.load %arg12[%c0_31, %c0_32, %c0_33] : memref<1x1x128xf32, #tpu.memory_space<vmem>>, vector<1x1x128xf32>
    %67 = vector.shape_cast %66 : vector<1x1x128xf32> to vector<1x128xf32>
    %68 = vector.shape_cast %65 : vector<1x128xf32> to vector<1x1x128xf32>
    tpu.vector_store %arg12[%c0_31, %c0_32, %c0_33], %68 {strides = array<i32>} : memref<1x1x128xf32, #tpu.memory_space<vmem>>, vector<1x1x128xf32>,
    return
  }
  func.func @transform_0(%arg0: i32) -> (i32, i32, i32) {
    %c0_i32 = arith.constant 0 : i32
    %c0_i32_0 = arith.constant 0 : i32
    %c0_i32_1 = arith.constant 0 : i32
    return %arg0, %c0_i32, %c0_i32_0 : i32, i32, i32
  }
  func.func @transform_1(%arg0: i32) -> (i32, i32) {
    %c0_i32 = arith.constant 0 : i32
    %c0_i32_0 = arith.constant 0 : i32
    %c0_i32_1 = arith.constant 0 : i32
    return %c0_i32, %c0_i32_0 : i32, i32
  }
  func.func @transform_2(%arg0: i32) -> (i32, i32) {
    %c0_i32 = arith.constant 0 : i32
    %c0_i32_0 = arith.constant 0 : i32
    %c0_i32_1 = arith.constant 0 : i32
    return %c0_i32, %c0_i32_0 : i32, i32
  }
  func.func @transform_3(%arg0: i32) -> (i32, i32) {
    %c0_i32 = arith.constant 0 : i32
    %c0_i32_0 = arith.constant 0 : i32
    %c0_i32_1 = arith.constant 0 : i32
    return %c0_i32, %c0_i32_0 : i32, i32
  }
  func.func @transform_4(%arg0: i32) -> (i32, i32) {
    %c0_i32 = arith.constant 0 : i32
    %c0_i32_0 = arith.constant 0 : i32
    %c0_i32_1 = arith.constant 0 : i32
    return %c0_i32, %c0_i32_0 : i32, i32
  }
  func.func @transform_5(%arg0: i32) -> (i32, i32) {
    %c0_i32 = arith.constant 0 : i32
    %c0_i32_0 = arith.constant 0 : i32
    %c0_i32_1 = arith.constant 0 : i32
    return %c0_i32, %c0_i32_0 : i32, i32
  }
  func.func @transform_6(%arg0: i32) -> (i32, i32) {
    %c0_i32 = arith.constant 0 : i32
    %c0_i32_0 = arith.constant 0 : i32
    %c0_i32_1 = arith.constant 0 : i32
    return %c0_i32, %c0_i32_0 : i32, i32
  }
  func.func @transform_7(%arg0: i32) -> (i32, i32) {
    %c0_i32 = arith.constant 0 : i32
    %c0_i32_0 = arith.constant 0 : i32
    %c0_i32_1 = arith.constant 0 : i32
    return %c0_i32, %c0_i32_0 : i32, i32
  }
  func.func @transform_8(%arg0: i32) -> (i32, i32) {
    %c0_i32 = arith.constant 0 : i32
    %c0_i32_0 = arith.constant 0 : i32
    %c0_i32_1 = arith.constant 0 : i32
    return %c0_i32, %c0_i32_0 : i32, i32
  }
  func.func @transform_9(%arg0: i32) -> (i32, i32) {
    %c0_i32 = arith.constant 0 : i32
    %c0_i32_0 = arith.constant 0 : i32
    %c0_i32_1 = arith.constant 0 : i32
    return %c0_i32, %c0_i32_0 : i32, i32
  }
  func.func @transform_10(%arg0: i32) -> (i32, i32) {
    %c0_i32 = arith.constant 0 : i32
    %c0_i32_0 = arith.constant 0 : i32
    %c0_i32_1 = arith.constant 0 : i32
    return %c0_i32, %c0_i32_0 : i32, i32
  }
  func.func @transform_11(%arg0: i32) -> (i32, i32, i32) {
    %c0_i32 = arith.constant 0 : i32
    %c0_i32_0 = arith.constant 0 : i32
    %c0_i32_1 = arith.constant 0 : i32
    return %arg0, %c0_i32, %c0_i32_0 : i32, i32, i32
  }
}

</mosaic_0001>

<llo_original>
// kernel: tpu_custom_call.1
$region0: #{tpu_custom_call.1}
  #allocation0 [shape = 'u32[]', space=smem, size = 0x4, offset = 0x4, fixed_abs, tag = 'smem constant byte address 0x4 - core index']
  #allocation1 [shape = 'u32[144,128]{1,0:T(1,128)}', space=vmem, size = 0x12000, scoped, tag = 'internal scratch']
  %s0 = inlined_call_operand.hbm [shape: bf16[2,24,56], index: 0, kind: input, shape index: {}]
  %s1 = inlined_call_operand.vmem [shape: f32[24,1], index: 1, kind: input, shape index: {}]
  %s2 = inlined_call_operand.vmem [shape: f32[1,24], index: 2, kind: input, shape index: {}]
  %s3 = inlined_call_operand.vmem [shape: bf16[56,128], index: 3, kind: input, shape index: {}]
  %s4 = inlined_call_operand.vmem [shape: f32[1,128], index: 4, kind: input, shape index: {}]
  %s5 = inlined_call_operand.hbm [shape: bf16[640,256], index: 5, kind: input, shape index: {}]
  %s6 = inlined_call_operand.vmem [shape: f32[1,256], index: 6, kind: input, shape index: {}]
  %s7 = inlined_call_operand.hbm [shape: bf16[768,128], index: 7, kind: input, shape index: {}]
  %s8 = inlined_call_operand.vmem [shape: f32[1,128], index: 8, kind: input, shape index: {}]
  %s9 = inlined_call_operand.hbm [shape: bf16[128,128], index: 9, kind: input, shape index: {}]
  %s10 = inlined_call_operand.vmem [shape: f32[1,128], index: 10, kind: input, shape index: {}]
  %s11 = inlined_call_operand.hbm [shape: f32[2,1,128], index: 11, kind: output, shape index: {}]
  %s12 = sld [smem:[#allocation0]]
  $region93: #{tpu_custom_call.1} parent=0
    _
  %s14 = ssub.s32 1, %s12
  %s15 = scalar_select 0, %s14, %s12
  $region1: #{tpu_custom_call.1} parent=0
    #allocation2 [shape = 'u8[12288]{0}', space=vmem, size = 0x3000, scoped, tag = 'input window, operand 0']
    #allocation3 [shape = 's32[2]{0}', space=sflag, size = 0x8, scoped, tag = 'scoped memory for tpu_custom_call.1']
    #allocation4 [shape = 's32[2]{0}', space=sflag, size = 0x8, scoped, tag = 'scoped memory for tpu_custom_call.1']
    #allocation5 [shape = 'u8[327680]{0}', space=vmem, size = 0x50000, scoped, tag = 'input window, operand 5, single buffered']
    #allocation6 [shape = 's32[1]{0}', space=sflag, size = 0x4, scoped, tag = 'scoped memory for tpu_custom_call.1']
    #allocation7 [shape = 'u8[196608]{0}', space=vmem, size = 0x30000, scoped, tag = 'input window, operand 7, single buffered']
    #allocation8 [shape = 'u8[32768]{0}', space=vmem, size = 0x8000, scoped, tag = 'input window, operand 9, single buffered']
    #allocation9 [shape = 's32[1]{0}', space=sflag, size = 0x4, scoped, tag = 'scoped memory for tpu_custom_call.1']
    #allocation10 [shape = 'u8[1024]{0}', space=vmem, size = 0x400, scoped, tag = 'output window, operand 0']
    %16 = vsyncpa [#allocation3], 0
    %s17 = scalar_lea.sflag [#allocation3], 1
    %18 = vsyncpa %s17, 0
    %19 = vsyncpa [#allocation6], 0
    %20 = vsyncpa [#allocation9], 0
    %21 = vsyncpa [#allocation4], 0
    %s22 = scalar_lea.sflag [#allocation4], 1
    %23 = vsyncpa %s22, 0
    loop: start=0, step=1, limit=4
    $region2: #{tpu_custom_call.1} parent=1 // loop_pre_header
      _
    $region3: #{tpu_custom_call.1} parent=1 // loop_header
      %s25 = sphi 0, %s29
      %p26 = scmp.ge.s32.totalorder %s25, 4
      %s35 = sphi 0, %s37
      %s38 = sphi 0, %s35
      %s39 = sphi 0, %s38
      %s55 = sphi 0, %s39
      %s59 = sphi 0, %s59
      %s61 = sphi 0, %s59
      %s62 = sphi 0, %s61
      %s76 = sphi 0, %s62
      %s80 = sphi 0, %s80
      %s82 = sphi 0, %s80
      %s83 = sphi 0, %s82
      %s97 = sphi 0, %s83
      %s101 = sphi 0, %s101
      %s103 = sphi 0, %s101
      %s104 = sphi 0, %s103
      %s118 = sphi 0, %s104
      %s122 = sphi 0, %s122
      %s124 = sphi 0, %s122
      %s125 = sphi 0, %s124
      %s139 = sphi 0, %s125
      %s143 = sphi 0, %s143
      %s145 = sphi 0, %s143
      %s146 = sphi 0, %s145
      %s160 = sphi 0, %s146
      %s164 = sphi 0, %s164
      %s166 = sphi 0, %s164
      %s167 = sphi 0, %s166
      %s181 = sphi 0, %s167
      %s185 = sphi 0, %s185
      %s187 = sphi 0, %s185
      %s188 = sphi 0, %s187
      %s202 = sphi 0, %s188
      %s206 = sphi 0, %s206
      %s208 = sphi 0, %s206
      %s209 = sphi 0, %s208
      %s223 = sphi 0, %s209
      %s227 = sphi 0, %s227
      %s229 = sphi 0, %s227
      %s230 = sphi 0, %s229
      %s244 = sphi 0, %s230
      %s248 = sphi 0, %s248
      %s250 = sphi 0, %s248
      %s251 = sphi 0, %s250
      %s265 = sphi 0, %s251
      %s271 = sphi 0, %s273
      %s274 = sphi 0, %s271
      %s275 = sphi 0, %s274
      %s291 = sphi 0, %s275
    $region4: #{tpu_custom_call.1} parent=1 // loop_header_branch
      %28 = sbr.rel (%p26) target = $region8
    $region5: #{tpu_custom_call.1} parent=1 // loop_body
      %s30 = ssub.s32 %s25, 1
      %s31 = ssub.s32 %s25, 2
      %s32 = sadd.s32 %s25, 1
      %s33 = ssub.s32 %s25, %s32
      %p34 = scmp.eq.s32.totalorder %s33, 0
      %s36 = sadd.s32 %s35, 1
      %s37 = scalar_select %p34, %s35, %s36
      %p40 = pneg %p34
      %p41 = scmp.eq.s32.totalorder %s25, 1
      %p42 = por %p40, %p41
      %p43 = scmp.ne.s32.totalorder %s35, %s38
      %p44 = scmp.eq.s32.totalorder %s25, 0
      %p45 = por %p43, %p44
      %p46 = scmp.ne.s32.totalorder %s35, %s38
      %p47 = scmp.eq.s32.totalorder %s30, 1
      %p48 = por %p46, %p47
      %p49 = scmp.ne.s32.totalorder %s38, %s39
      %p50 = scmp.eq.s32.totalorder %s30, 0
      %p51 = por %p49, %p50
      %p52 = scmp.ne.s32.totalorder %s38, %s39
      %p53 = scmp.eq.s32.totalorder %s31, 1
      %p54 = por %p52, %p53
      %p56 = scmp.ne.s32.totalorder %s39, %s55
      %p57 = scmp.eq.s32.totalorder %s31, 0
      %p58 = por %p56, %p57
      %s60 = sadd.s32 %s59, 1
      %p63 = scmp.eq.s32.totalorder %s25, 1
      %p64 = scmp.ne.s32.totalorder %s59, %s61
      %p65 = scmp.eq.s32.totalorder %s25, 0
      %p66 = por %p64, %p65
      %p67 = scmp.ne.s32.totalorder %s59, %s61
      %p68 = scmp.eq.s32.totalorder %s30, 1
      %p69 = por %p67, %p68
      %p70 = scmp.ne.s32.totalorder %s61, %s62
      %p71 = scmp.eq.s32.totalorder %s30, 0
      %p72 = por %p70, %p71
      %p73 = scmp.ne.s32.totalorder %s61, %s62
      %p74 = scmp.eq.s32.totalorder %s31, 1
      %p75 = por %p73, %p74
      %p77 = scmp.ne.s32.totalorder %s62, %s76
      %p78 = scmp.eq.s32.totalorder %s31, 0
      %p79 = por %p77, %p78
      %s81 = sadd.s32 %s80, 1
      %p84 = scmp.eq.s32.totalorder %s25, 1
      %p85 = scmp.ne.s32.totalorder %s80, %s82
      %p86 = scmp.eq.s32.totalorder %s25, 0
      %p87 = por %p85, %p86
      %p88 = scmp.ne.s32.totalorder %s80, %s82
      %p89 = scmp.eq.s32.totalorder %s30, 1
      %p90 = por %p88, %p89
      %p91 = scmp.ne.s32.totalorder %s82, %s83
      %p92 = scmp.eq.s32.totalorder %s30, 0
      %p93 = por %p91, %p92
      %p94 = scmp.ne.s32.totalorder %s82, %s83
      %p95 = scmp.eq.s32.totalorder %s31, 1
      %p96 = por %p94, %p95
      %p98 = scmp.ne.s32.totalorder %s83, %s97
      %p99 = scmp.eq.s32.totalorder %s31, 0
      %p100 = por %p98, %p99
      %s102 = sadd.s32 %s101, 1
      %p105 = scmp.eq.s32.totalorder %s25, 1
      %p106 = scmp.ne.s32.totalorder %s101, %s103
      %p107 = scmp.eq.s32.totalorder %s25, 0
      %p108 = por %p106, %p107
      %p109 = scmp.ne.s32.totalorder %s101, %s103
      %p110 = scmp.eq.s32.totalorder %s30, 1
      %p111 = por %p109, %p110
      %p112 = scmp.ne.s32.totalorder %s103, %s104
      %p113 = scmp.eq.s32.totalorder %s30, 0
      %p114 = por %p112, %p113
      %p115 = scmp.ne.s32.totalorder %s103, %s104
      %p116 = scmp.eq.s32.totalorder %s31, 1
      %p117 = por %p115, %p116
      %p119 = scmp.ne.s32.totalorder %s104, %s118
      %p120 = scmp.eq.s32.totalorder %s31, 0
      %p121 = por %p119, %p120
      %s123 = sadd.s32 %s122, 1
      %p126 = scmp.eq.s32.totalorder %s25, 1
      %p127 = scmp.ne.s32.totalorder %s122, %s124
      %p128 = scmp.eq.s32.totalorder %s25, 0
      %p129 = por %p127, %p128
      %p130 = scmp.ne.s32.totalorder %s122, %s124
      %p131 = scmp.eq.s32.totalorder %s30, 1
      %p132 = por %p130, %p131
      %p133 = scmp.ne.s32.totalorder %s124, %s125
      %p134 = scmp.eq.s32.totalorder %s30, 0
      %p135 = por %p133, %p134
      %p136 = scmp.ne.s32.totalorder %s124, %s125
      %p137 = scmp.eq.s32.totalorder %s31, 1
      %p138 = por %p136, %p137
      %p140 = scmp.ne.s32.totalorder %s125, %s139
      %p141 = scmp.eq.s32.totalorder %s31, 0
      %p142 = por %p140, %p141
      %s144 = sadd.s32 %s143, 1
      %p147 = scmp.eq.s32.totalorder %s25, 1
      %p148 = scmp.ne.s32.totalorder %s143, %s145
      %p149 = scmp.eq.s32.totalorder %s25, 0
      %p150 = por %p148, %p149
      %p151 = scmp.ne.s32.totalorder %s143, %s145
      %p152 = scmp.eq.s32.totalorder %s30, 1
      %p153 = por %p151, %p152
      %p154 = scmp.ne.s32.totalorder %s145, %s146
      %p155 = scmp.eq.s32.totalorder %s30, 0
      %p156 = por %p154, %p155
      %p157 = scmp.ne.s32.totalorder %s145, %s146
      %p158 = scmp.eq.s32.totalorder %s31, 1
      %p159 = por %p157, %p158
      %p161 = scmp.ne.s32.totalorder %s146, %s160
      %p162 = scmp.eq.s32.totalorder %s31, 0
      %p163 = por %p161, %p162
      %s165 = sadd.s32 %s164, 1
      %p168 = scmp.eq.s32.totalorder %s25, 1
      %p169 = scmp.ne.s32.totalorder %s164, %s166
      %p170 = scmp.eq.s32.totalorder %s25, 0
      %p171 = por %p169, %p170
      %p172 = scmp.ne.s32.totalorder %s164, %s166
      %p173 = scmp.eq.s32.totalorder %s30, 1
      %p174 = por %p172, %p173
      %p175 = scmp.ne.s32.totalorder %s166, %s167
      %p176 = scmp.eq.s32.totalorder %s30, 0
      %p177 = por %p175, %p176
      %p178 = scmp.ne.s32.totalorder %s166, %s167
      %p179 = scmp.eq.s32.totalorder %s31, 1
      %p180 = por %p178, %p179
      %p182 = scmp.ne.s32.totalorder %s167, %s181
      %p183 = scmp.eq.s32.totalorder %s31, 0
      %p184 = por %p182, %p183
      %s186 = sadd.s32 %s185, 1
      %p189 = scmp.eq.s32.totalorder %s25, 1
      %p190 = scmp.ne.s32.totalorder %s185, %s187
      %p191 = scmp.eq.s32.totalorder %s25, 0
      %p192 = por %p190, %p191
      %p193 = scmp.ne.s32.totalorder %s185, %s187
      %p194 = scmp.eq.s32.totalorder %s30, 1
      %p195 = por %p193, %p194
      %p196 = scmp.ne.s32.totalorder %s187, %s188
      %p197 = scmp.eq.s32.totalorder %s30, 0
      %p198 = por %p196, %p197
      %p199 = scmp.ne.s32.totalorder %s187, %s188
      %p200 = scmp.eq.s32.totalorder %s31, 1
      %p201 = por %p199, %p200
      %p203 = scmp.ne.s32.totalorder %s188, %s202
      %p204 = scmp.eq.s32.totalorder %s31, 0
      %p205 = por %p203, %p204
      %s207 = sadd.s32 %s206, 1
      %p210 = scmp.eq.s32.totalorder %s25, 1
      %p211 = scmp.ne.s32.totalorder %s206, %s208
      %p212 = scmp.eq.s32.totalorder %s25, 0
      %p213 = por %p211, %p212
      %p214 = scmp.ne.s32.totalorder %s206, %s208
      %p215 = scmp.eq.s32.totalorder %s30, 1
      %p216 = por %p214, %p215
      %p217 = scmp.ne.s32.totalorder %s208, %s209
      %p218 = scmp.eq.s32.totalorder %s30, 0
      %p219 = por %p217, %p218
      %p220 = scmp.ne.s32.totalorder %s208, %s209
      %p221 = scmp.eq.s32.totalorder %s31, 1
      %p222 = por %p220, %p221
      %p224 = scmp.ne.s32.totalorder %s209, %s223
      %p225 = scmp.eq.s32.totalorder %s31, 0
      %p226 = por %p224, %p225
      %s228 = sadd.s32 %s227, 1
      %p231 = scmp.eq.s32.totalorder %s25, 1
      %p232 = scmp.ne.s32.totalorder %s227, %s229
      %p233 = scmp.eq.s32.totalorder %s25, 0
      %p234 = por %p232, %p233
      %p235 = scmp.ne.s32.totalorder %s227, %s229
      %p236 = scmp.eq.s32.totalorder %s30, 1
      %p237 = por %p235, %p236
      %p238 = scmp.ne.s32.totalorder %s229, %s230
      %p239 = scmp.eq.s32.totalorder %s30, 0
      %p240 = por %p238, %p239
      %p241 = scmp.ne.s32.totalorder %s229, %s230
      %p242 = scmp.eq.s32.totalorder %s31, 1
      %p243 = por %p241, %p242
      %p245 = scmp.ne.s32.totalorder %s230, %s244
      %p246 = scmp.eq.s32.totalorder %s31, 0
      %p247 = por %p245, %p246
      %s249 = sadd.s32 %s248, 1
      %p252 = scmp.eq.s32.totalorder %s25, 1
      %p253 = scmp.ne.s32.totalorder %s248, %s250
      %p254 = scmp.eq.s32.totalorder %s25, 0
      %p255 = por %p253, %p254
      %p256 = scmp.ne.s32.totalorder %s248, %s250
      %p257 = scmp.eq.s32.totalorder %s30, 1
      %p258 = por %p256, %p257
      %p259 = scmp.ne.s32.totalorder %s250, %s251
      %p260 = scmp.eq.s32.totalorder %s30, 0
      %p261 = por %p259, %p260
      %p262 = scmp.ne.s32.totalorder %s250, %s251
      %p263 = scmp.eq.s32.totalorder %s31, 1
      %p264 = por %p262, %p263
      %p266 = scmp.ne.s32.totalorder %s251, %s265
      %p267 = scmp.eq.s32.totalorder %s31, 0
      %p268 = por %p266, %p267
      %s269 = ssub.s32 %s25, %s32
      %p270 = scmp.eq.s32.totalorder %s269, 0
      %s272 = sadd.s32 %s271, 1
      %s273 = scalar_select %p270, %s271, %s272
      %p276 = pneg %p270
      %p277 = scmp.eq.s32.totalorder %s25, 1
      %p278 = por %p276, %p277
      %p279 = scmp.ne.s32.totalorder %s271, %s274
      %p280 = scmp.eq.s32.totalorder %s25, 0
      %p281 = por %p279, %p280
      %p282 = scmp.ne.s32.totalorder %s271, %s274
      %p283 = scmp.eq.s32.totalorder %s30, 1
      %p284 = por %p282, %p283
      %p285 = scmp.ne.s32.totalorder %s274, %s275
      %p286 = scmp.eq.s32.totalorder %s30, 0
      %p287 = por %p285, %p286
      %p288 = scmp.ne.s32.totalorder %s274, %s275
      %p289 = scmp.eq.s32.totalorder %s31, 1
      %p290 = por %p288, %p289
      %p292 = scmp.ne.s32.totalorder %s275, %s291
      %p293 = scmp.eq.s32.totalorder %s31, 0
      %p294 = por %p292, %p293
      %p295 = scmp.le.s32.totalorder 1, %s25
      %p296 = scmp.lt.s32.totalorder %s25, 3
      %p297 = pnand %p295, %p296
      %p298 = pneg %p297
      // Predicated region
      $region9: #{tpu_custom_call.1} parent=5 // pred_check
        _
      $region10: #{tpu_custom_call.1} parent=5 // pred_check_branch
        %300 = sbr.rel (%p297) target = $region12
      $region11: #{tpu_custom_call.1} parent=5 // pred_region
        %s301 = ssub.s32 %s25, 1
        // Predicated region
        $region13: #{tpu_custom_call.1} parent=11 // pred_check
          %p302 = pneg %p72
        $region14: #{tpu_custom_call.1} parent=11 // pred_check_branch
          %304 = sbr.rel (%p302) target = $region16
        $region15: #{tpu_custom_call.1} parent=11 // pred_region
          _
        $region16: #{tpu_custom_call.1} parent=11 // pred_fallthru
          _
        // Predicated region
        $region17: #{tpu_custom_call.1} parent=11 // pred_check
          %p305 = pneg %p93
        $region18: #{tpu_custom_call.1} parent=11 // pred_check_branch
          %307 = sbr.rel (%p305) target = $region20
        $region19: #{tpu_custom_call.1} parent=11 // pred_region
          _
        $region20: #{tpu_custom_call.1} parent=11 // pred_fallthru
          _
        // Predicated region
        $region21: #{tpu_custom_call.1} parent=11 // pred_check
          %p308 = pneg %p114
        $region22: #{tpu_custom_call.1} parent=11 // pred_check_branch
          %310 = sbr.rel (%p308) target = $region24
        $region23: #{tpu_custom_call.1} parent=11 // pred_region
          _
        $region24: #{tpu_custom_call.1} parent=11 // pred_fallthru
          _
        // Predicated region
        $region25: #{tpu_custom_call.1} parent=11 // pred_check
          %p311 = pneg %p135
        $region26: #{tpu_custom_call.1} parent=11 // pred_check_branch
          %313 = sbr.rel (%p311) target = $region28
        $region27: #{tpu_custom_call.1} parent=11 // pred_region
          _
        $region28: #{tpu_custom_call.1} parent=11 // pred_fallthru
          _
        // Predicated region
        $region29: #{tpu_custom_call.1} parent=11 // pred_check
          %p314 = pneg %p156
        $region30: #{tpu_custom_call.1} parent=11 // pred_check_branch
          %316 = sbr.rel (%p314) target = $region32
        $region31: #{tpu_custom_call.1} parent=11 // pred_region
          %s318 = ssub.s32 10240, 10240
          %319 = vsyncadd [#allocation6], %s318
          %s320 = sshll.u32 [#allocation5], 4
          %s321 = int_to_ptr.vmem [resolvable:$true] %s320
          %326 = dma.hbm_to_vmem [thread:$0]  %s5, 10240, %s321, [#allocation6], 128, 128, 8
        $region32: #{tpu_custom_call.1} parent=11 // pred_fallthru
          _
        // Predicated region
        $region33: #{tpu_custom_call.1} parent=11 // pred_check
          %p327 = pneg %p177
        $region34: #{tpu_custom_call.1} parent=11 // pred_check_branch
          %329 = sbr.rel (%p327) target = $region36
        $region35: #{tpu_custom_call.1} parent=11 // pred_region
          _
        $region36: #{tpu_custom_call.1} parent=11 // pred_fallthru
          _
        // Predicated region
        $region37: #{tpu_custom_call.1} parent=11 // pred_check
          %p330 = pneg %p198
        $region38: #{tpu_custom_call.1} parent=11 // pred_check_branch
          %332 = sbr.rel (%p330) target = $region40
        $region39: #{tpu_custom_call.1} parent=11 // pred_region
          %s334 = ssub.s32 6144, 6144
          %335 = vsyncadd [#allocation6], %s334
          %s336 = sshll.u32 [#allocation7], 4
          %s337 = int_to_ptr.vmem [resolvable:$true] %s336
          %342 = dma.hbm_to_vmem [thread:$0]  %s7, 6144, %s337, [#allocation6], 64, 64, 4
        $region40: #{tpu_custom_call.1} parent=11 // pred_fallthru
          _
        // Predicated region
        $region41: #{tpu_custom_call.1} parent=11 // pred_check
          %p343 = pneg %p219
        $region42: #{tpu_custom_call.1} parent=11 // pred_check_branch
          %345 = sbr.rel (%p343) target = $region44
        $region43: #{tpu_custom_call.1} parent=11 // pred_region
          _
        $region44: #{tpu_custom_call.1} parent=11 // pred_fallthru
          _
        // Predicated region
        $region45: #{tpu_custom_call.1} parent=11 // pred_check
          %p346 = pneg %p240
        $region46: #{tpu_custom_call.1} parent=11 // pred_check_branch
          %348 = sbr.rel (%p346) target = $region48
        $region47: #{tpu_custom_call.1} parent=11 // pred_region
          %s350 = ssub.s32 1024, 1024
          %351 = vsyncadd [#allocation9], %s350
          %s352 = sshll.u32 [#allocation8], 4
          %s353 = int_to_ptr.vmem [resolvable:$true] %s352
          %358 = dma.hbm_to_vmem [thread:$0]  %s9, 1024, %s353, [#allocation9], 64, 64, 4
        $region48: #{tpu_custom_call.1} parent=11 // pred_fallthru
          _
        // Predicated region
        $region49: #{tpu_custom_call.1} parent=11 // pred_check
          %p359 = pneg %p261
        $region50: #{tpu_custom_call.1} parent=11 // pred_check_branch
          %361 = sbr.rel (%p359) target = $region52
        $region51: #{tpu_custom_call.1} parent=11 // pred_region
          _
        $region52: #{tpu_custom_call.1} parent=11 // pred_fallthru
          _
      $region12: #{tpu_custom_call.1} parent=5 // pred_fallthru
        _
      %p362 = scmp.lt.s32.totalorder %s25, 2
      // Predicated region
      $region53: #{tpu_custom_call.1} parent=5 // pred_check
        %p363 = pneg %p362
      $region54: #{tpu_custom_call.1} parent=5 // pred_check_branch
        %365 = sbr.rel (%p363) target = $region56
      $region55: #{tpu_custom_call.1} parent=5 // pred_region
        // Predicated region
        $region57: #{tpu_custom_call.1} parent=55 // pred_check
          %p366 = pneg %p45
        $region58: #{tpu_custom_call.1} parent=55 // pred_check_branch
          %368 = sbr.rel (%p366) target = $region60
        $region59: #{tpu_custom_call.1} parent=55 // pred_region
          %s369 = sand.u32 %s35, 1
          %s370 = scalar_lea.sflag [#allocation3], %s369
          %s371 = sand.u32 %s35, 1
          %s372 = smul.addr %s371, 12
          %s373 = scalar_lea.vmem [#allocation2], %s372
          %s375 = ssub.s32 192, 192
          %376 = vsyncadd %s370, %s375
          %s377 = smul.addr %s25, 3
          %s378 = smul.addr %s377, 64
          %s379 = scalar_lea.hbm %s0, %s378
          %s380 = sshll.u32 %s373, 4
          %s381 = int_to_ptr.vmem [resolvable:$true] %s380
          %386 = dma.hbm_to_vmem [thread:$0]  %s379, 192, %s381, %s370, 64, 64, 4
        $region60: #{tpu_custom_call.1} parent=55 // pred_fallthru
          _
      $region56: #{tpu_custom_call.1} parent=5 // pred_fallthru
        _
      %p387 = scmp.le.s32.totalorder 1, %s25
      %p388 = scmp.lt.s32.totalorder %s25, 3
      %p389 = pnand %p387, %p388
      %p390 = pneg %p389
      // Predicated region
      $region61: #{tpu_custom_call.1} parent=5 // pred_check
        _
      $region62: #{tpu_custom_call.1} parent=5 // pred_check_branch
        %392 = sbr.rel (%p389) target = $region64
      $region63: #{tpu_custom_call.1} parent=5 // pred_region
        %s393 = ssub.s32 %s25, 1
        %s394 = sand.u32 %s38, 1
        %s395 = scalar_lea.sflag [#allocation3], %s394
        %s396 = sand.u32 %s38, 1
        %s397 = smul.addr %s396, 12
        %s398 = scalar_lea.vmem [#allocation2], %s397
        // Predicated region
        $region65: #{tpu_custom_call.1} parent=63 // pred_check
          %p399 = pneg %p51
        $region66: #{tpu_custom_call.1} parent=63 // pred_check_branch
          %401 = sbr.rel (%p399) target = $region68
        $region67: #{tpu_custom_call.1} parent=63 // pred_region
          %402 = dma.done %s395, 192
        $region68: #{tpu_custom_call.1} parent=63 // pred_fallthru
          _
        // Predicated region
        $region69: #{tpu_custom_call.1} parent=63 // pred_check
          %p403 = pneg %p156
        $region70: #{tpu_custom_call.1} parent=63 // pred_check_branch
          %405 = sbr.rel (%p403) target = $region72
        $region71: #{tpu_custom_call.1} parent=63 // pred_region
          %406 = dma.done [#allocation6], 10240
        $region72: #{tpu_custom_call.1} parent=63 // pred_fallthru
          _
        // Predicated region
        $region73: #{tpu_custom_call.1} parent=63 // pred_check
          %p407 = pneg %p198
        $region74: #{tpu_custom_call.1} parent=63 // pred_check_branch
          %409 = sbr.rel (%p407) target = $region76
        $region75: #{tpu_custom_call.1} parent=63 // pred_region
          %410 = dma.done [#allocation6], 6144
        $region76: #{tpu_custom_call.1} parent=63 // pred_fallthru
          _
        // Predicated region
        $region77: #{tpu_custom_call.1} parent=63 // pred_check
          %p411 = pneg %p240
        $region78: #{tpu_custom_call.1} parent=63 // pred_check_branch
          %413 = sbr.rel (%p411) target = $region80
        $region79: #{tpu_custom_call.1} parent=63 // pred_region
          %414 = dma.done [#allocation9], 1024
        $region80: #{tpu_custom_call.1} parent=63 // pred_fallthru
          _
        %s415 = sand.u32 %s38, 1
        %s416 = scalar_lea.sflag [#allocation3], %s415
        %s417 = sand.u32 %s38, 1
        %s418 = smul.addr %s417, 12
        %s419 = scalar_lea.vmem [#allocation2], %s418
        %p420 = pneg %p51
        %p421 = pneg %p48
        %p422 = pneg %p72
        %p423 = pneg %p69
        %p424 = pneg %p93
        %p425 = pneg %p90
        %p426 = pneg %p114
        %p427 = pneg %p111
        %p428 = pneg %p135
        %p429 = pneg %p132
        %p430 = pneg %p156
        %p431 = pneg %p153
        %p432 = pneg %p177
        %p433 = pneg %p174
        %p434 = pneg %p198
        %p435 = pneg %p195
        %p436 = pneg %p219
        %p437 = pneg %p216
        %p438 = pneg %p240
        %p439 = pneg %p237
        %p440 = pneg %p261
        %p441 = pneg %p258
        %p442 = pneg %p287
        %p443 = pneg %p284
        %s444 = sand.u32 %s274, 1
        %s445 = scalar_lea.sflag [#allocation4], %s444
        %s446 = sand.u32 %s274, 1
        %s447 = scalar_lea.vmem [#allocation10], %s446
        %v449 = vld [vmem:[%s1] sm:$0xff]
        %v450 = vld [vmem:[%s1 + $0x8] sm:$0xff]
        %v451 = vld [vmem:[%s1 + $0x10] sm:$0xff]
        %v452 = vld [vmem:[%s398] sm:$0xf]
        %v453 = vld [vmem:[%s398 + $0x4] sm:$0xf]
        %v454 = vld [vmem:[%s398 + $0x8] sm:$0xf]
        %v455 = vld [vmem:[%s3] sm:$0xf]
        %v456 = vld [vmem:[%s3 + $0x4] sm:$0xf]
        %v457 = vld [vmem:[%s3 + $0x8] sm:$0xf]
        %v458 = vld [vmem:[%s3 + $0xc] sm:$0xf]
        %v459 = vld [vmem:[%s3 + $0x10] sm:$0xf]
        %v460 = vld [vmem:[%s3 + $0x14] sm:$0xf]
        %v461 = vld [vmem:[%s3 + $0x18] sm:$0xf]
        %v462 = vld [vmem:[%s4] sm:$0x1]
        %v464 = vlaneseq
        %v465 = vshrl.u32 %v464, 7
        %v466 = vsub.s32 0, %v465
        %v467 = vrot.slane %v462, %v466
        %v472 = vunpack.c.l.b16 %v452
        %v473 = vunpack.c.l.b16 %v453
        %v474 = vunpack.c.l.b16 %v454
        %v475 = vpack.c.b16 %v473, %v472
        %v476 = vpack.c.b16 %v474, %v474
        %v484 = vunpack.c.l.b16 %v455
        %v485 = vunpack.c.l.b16 %v456
        %v486 = vunpack.c.l.b16 %v457
        %v487 = vunpack.c.l.b16 %v458
        %v488 = vunpack.c.l.b16 %v459
        %v489 = vunpack.c.l.b16 %v460
        %v490 = vunpack.c.l.b16 %v461
        %v491 = vpack.c.b16 %v485, %v484
        %v492 = vpack.c.b16 %v487, %v486
        %v493 = vpack.c.b16 %v489, %v488
        %v494 = vpack.c.b16 %v490, %v490
        %vm498 = vcmask 457728
        %v500 = vsel %vm498, %v475, 0
        %v503 = vsel %vm498, %v476, 0
        %vm505 = vcmask 1043456
        %v507 = vsel %vm505, %v494, 0
        %509 = vmatprep.subr.bf16.mxu0 0
        %510 = vmatpush1.bf16.msra.mxu0 %v491
        %511 = vmatprep.subr.bf16.mxu0 0
        %512 = vmatpush1.bf16.msra.mxu0 %v492
        %513 = vmatprep.subr.bf16.mxu0 0
        %514 = vmatpush1.bf16.msra.mxu0 %v493
        %515 = vmatprep.subr.bf16.mxu0 0
        %516 = vmatpush1.bf16.msra.mxu0 %v507
        %517 = vmatprep.subr.bf16.mxu0 0
        %518 = vmatpush1.bf16.msra.mxu0 0
        %519 = vmatprep.subr.bf16.mxu0 0
        %520 = vmatpush1.bf16.msra.mxu0 0
        %521 = vmatprep.subr.bf16.mxu0 0
        %522 = vmatpush1.bf16.msra.mxu0 0
        %523 = vmatprep.subr.bf16.mxu0 0
        %524 = vmatpush1.bf16.msra.mxu0 0
        %525 = vmatprep.subr.bf16.mxu0 0
        %526 = vmatpush1.bf16.msra.mxu0 0
        %527 = vmatprep.subr.bf16.mxu0 0
        %528 = vmatpush1.bf16.msra.mxu0 0
        %529 = vmatprep.subr.bf16.mxu0 0
        %530 = vmatpush1.bf16.msra.mxu0 0
        %531 = vmatprep.subr.bf16.mxu0 0
        %532 = vmatpush1.bf16.msra.mxu0 0
        %533 = vmatprep.subr.bf16.mxu0 0
        %534 = vmatpush1.bf16.msra.mxu0 0
        %535 = vmatprep.subr.bf16.mxu0 0
        %536 = vmatpush1.bf16.msra.mxu0 0
        %537 = vmatprep.subr.bf16.mxu0 0
        %538 = vmatpush1.bf16.msra.mxu0 0
        %539 = vmatprep.subr.bf16.mxu0 0
        %540 = vmatpush1.bf16.msra.mxu0 0
        %541 = vmatprep.mubr.bf16.mxu0 0
        %542 = vmatmul.mubr.bf16.gmra.mrb[0].mxu0 %v500
        %v543 = vpop.f32.mrb[0].mxu0
        %v544 = vadd.f32 %v467, %v543
        %v545 = vpop.f32.mrb[0].mxu0
        %v546 = vpop.f32.mrb[0].mxu0
        %v547 = vadd.f32 %v467, %v546
        %v548 = vpop.f32.mrb[0].mxu0
        %549 = vmatprep.mubr.bf16.mxu0 0
        %550 = vmatmul.mubr.bf16.gmra.mrb[0].mxu0 %v503
        %v551 = vpop.f32.mrb[0].mxu0
        %v552 = vadd.f32 %v467, %v551
        %v553 = vpop.f32.mrb[0].mxu0
        %v554 = vpop.f32.mrb[0].mxu0
        %v555 = vpop.f32.mrb[0].mxu0
        %556 = vdwg.mxu0
        %v557 = vxor.u32 %v544, 2147483648
        %v558 = vxor.u32 %v547, 2147483648
        %v559 = vxor.u32 %v552, 2147483648
        %v560 = vmul.f32 %v557, 1.442695
        %v561 = vpow.pop %v560
        %v562 = vmul.f32 %v558, 1.442695
        %v563 = vpow.pop %v562
        %v564 = vmul.f32 %v559, 1.442695
        %v565 = vpow.pop %v564
        %v566 = vadd.f32 %v561, 1.0
        %v567 = vadd.f32 %v563, 1.0
        %v568 = vadd.f32 %v565, 1.0
        %v569 = vrcp.pop %v566
        %v570 = vmul.f32 1.0, %v569
        %v571 = vrcp.pop %v567
        %v572 = vmul.f32 1.0, %v571
        %v573 = vrcp.pop %v568
        %v574 = vmul.f32 1.0, %v573
        %576 = vset.pattern.permute.xlu0 0
        %577 = vperm.xlu0 %576, %v449
        %v578 = vpop.permute.xlu0 %577
        %581 = vset.pattern.permute.xlu0 0
        %582 = vperm.xlu0 %581, %v450
        %v583 = vpop.permute.xlu0 %582
        %586 = vset.pattern.permute.xlu0 0
        %587 = vperm.xlu0 %586, %v451
        %v588 = vpop.permute.xlu0 %587
        %v590 = vmul.f32 %v570, %v578
        %v591 = vmul.f32 %v572, %v583
        %v592 = vmul.f32 %v574, %v588
        %vm596 = vcmask 1041408
        %v597 = vrot.slane %v590, 6
        %v598 = vrot.slane %v591, 6
        %v599 = vsel %vm596, %v597, %v598
        %v600 = vrot.slane %v592, 6
        %v601 = vsel %vm596, %v598, %v600
        %v606 = vsel %vm596, 0.0, %v597
        %v607 = vsel %vm596, %v600, 0.0
        %v608 = vpack.c.bf16 %v599, %v606
        %v609 = vpack.c.bf16 %v601, %v601
        %v610 = vpack.c.bf16 %v607, %v601
        %vm611 = vsmask.f32 7424
        %v613 = vshrl.u32 %v608, 16
        %v615 = vshll.u32 %v608, 16
        %v617 = vrot.slane %v615, 1
        %v618 = vor.u32 %v613, %v617
        %v620 = vshll.u32 %v610, 16
        %v622 = vrot.slane %v620, 1
        %v623 = vsel %vm611, %v618, %v622
        %v624 = vshrl.u32 %v610, 16
        %v626 = vor.u32 %v624, %v622
        %vm631 = vcmask 1046528
        %v632 = vrot.slane %v608, 1
        %v633 = vrot.slane %v610, 1
        %v634 = vsel %vm631, %v632, %v633
        %vm637 = vsmask.f32 6400
        %v638 = vrot.slane %v613, 1
        %v639 = vrot.slane %v615, 2
        %v640 = vor.u32 %v638, %v639
        %v641 = vrot.slane %v624, 1
        %v642 = vrot.slane %v620, 2
        %v643 = vor.u32 %v641, %v642
        %v644 = vsel %vm637, %v640, %v643
        %vm647 = vcmask 1045504
        %v648 = vrot.slane %v608, 2
        %v649 = vrot.slane %v610, 2
        %v650 = vsel %vm647, %v648, %v649
        %v653 = vld [vmem:[#allocation5] sm:$0xff]
        %v654 = vld [vmem:[#allocation5 + $0x8] sm:$0xff]
        %v655 = vld [vmem:[#allocation5 + $0x10] sm:$0xff]
        %v656 = vld [vmem:[#allocation5 + $0x18] sm:$0xff]
        %v657 = vld [vmem:[#allocation5 + $0x20] sm:$0xff]
        %v658 = vld [vmem:[#allocation5 + $0x28] sm:$0xff]
        %v659 = vld [vmem:[#allocation5 + $0x30] sm:$0xff]
        %v660 = vld [vmem:[#allocation5 + $0x38] sm:$0xff]
        %v661 = vld [vmem:[#allocation5 + $0x40] sm:$0xff]
        %v662 = vld [vmem:[#allocation5 + $0x48] sm:$0xff]
        %v663 = vld [vmem:[#allocation5 + $0x50] sm:$0xff]
        %v664 = vld [vmem:[#allocation5 + $0x58] sm:$0xff]
        %v665 = vld [vmem:[#allocation5 + $0x60] sm:$0xff]
        %v666 = vld [vmem:[#allocation5 + $0x68] sm:$0xff]
        %v667 = vld [vmem:[#allocation5 + $0x70] sm:$0xff]
        %v668 = vld [vmem:[#allocation5 + $0x78] sm:$0xff]
        %v669 = vld [vmem:[#allocation5 + $0x80] sm:$0xff]
        %v670 = vld [vmem:[#allocation5 + $0x88] sm:$0xff]
        %v671 = vld [vmem:[#allocation5 + $0x90] sm:$0xff]
        %v672 = vld [vmem:[#allocation5 + $0x98] sm:$0xff]
        %v673 = vld [vmem:[#allocation5 + $0xa0] sm:$0xff]
        %v674 = vld [vmem:[#allocation5 + $0xa8] sm:$0xff]
        %v675 = vld [vmem:[#allocation5 + $0xb0] sm:$0xff]
        %v676 = vld [vmem:[#allocation5 + $0xb8] sm:$0xff]
        %v677 = vld [vmem:[#allocation5 + $0xc0] sm:$0xff]
        %v678 = vld [vmem:[#allocation5 + $0xc8] sm:$0xff]
        %v679 = vld [vmem:[#allocation5 + $0xd0] sm:$0xff]
        %v680 = vld [vmem:[#allocation5 + $0xd8] sm:$0xff]
        %v681 = vld [vmem:[#allocation5 + $0xe0] sm:$0xff]
        %v682 = vld [vmem:[#allocation5 + $0xe8] sm:$0xff]
        %v683 = vld [vmem:[#allocation5 + $0xf0] sm:$0xff]
        %v684 = vld [vmem:[#allocation5 + $0xf8] sm:$0xff]
        %v685 = vld [vmem:[#allocation5 + $0x100] sm:$0xff]
        %v686 = vld [vmem:[#allocation5 + $0x108] sm:$0xff]
        %v687 = vld [vmem:[#allocation5 + $0x110] sm:$0xff]
        %v688 = vld [vmem:[#allocation5 + $0x118] sm:$0xff]
        %v689 = vld [vmem:[#allocation5 + $0x120] sm:$0xff]
        %v690 = vld [vmem:[#allocation5 + $0x128] sm:$0xff]
        %v691 = vld [vmem:[#allocation5 + $0x130] sm:$0xff]
        %v692 = vld [vmem:[#allocation5 + $0x138] sm:$0xff]
        %v693 = vld [vmem:[#allocation5 + $0x140] sm:$0xff]
        %v694 = vld [vmem:[#allocation5 + $0x148] sm:$0xff]
        %v695 = vld [vmem:[#allocation5 + $0x150] sm:$0xff]
        %v696 = vld [vmem:[#allocation5 + $0x158] sm:$0xff]
        %v697 = vld [vmem:[#allocation5 + $0x160] sm:$0xff]
        %v698 = vld [vmem:[#allocation5 + $0x168] sm:$0xff]
        %v699 = vld [vmem:[#allocation5 + $0x170] sm:$0xff]
        %v700 = vld [vmem:[#allocation5 + $0x178] sm:$0xff]
        %v701 = vld [vmem:[#allocation5 + $0x180] sm:$0xff]
        %v702 = vld [vmem:[#allocation5 + $0x188] sm:$0xff]
        %v703 = vld [vmem:[#allocation5 + $0x190] sm:$0xff]
        %v704 = vld [vmem:[#allocation5 + $0x198] sm:$0xff]
        %v705 = vld [vmem:[#allocation5 + $0x1a0] sm:$0xff]
        %v706 = vld [vmem:[#allocation5 + $0x1a8] sm:$0xff]
        %v707 = vld [vmem:[#allocation5 + $0x1b0] sm:$0xff]
        %v708 = vld [vmem:[#allocation5 + $0x1b8] sm:$0xff]
        %v709 = vld [vmem:[#allocation5 + $0x1c0] sm:$0xff]
        %v710 = vld [vmem:[#allocation5 + $0x1c8] sm:$0xff]
        %v711 = vld [vmem:[#allocation5 + $0x1d0] sm:$0xff]
        %v712 = vld [vmem:[#allocation5 + $0x1d8] sm:$0xff]
        %v713 = vld [vmem:[#allocation5 + $0x1e0] sm:$0xff]
        %v714 = vld [vmem:[#allocation5 + $0x1e8] sm:$0xff]
        %v715 = vld [vmem:[#allocation5 + $0x1f0] sm:$0xff]
        %v716 = vld [vmem:[#allocation5 + $0x1f8] sm:$0xff]
        %v717 = vld [vmem:[#allocation5 + $0x200] sm:$0xff]
        %v718 = vld [vmem:[#allocation5 + $0x208] sm:$0xff]
        %v719 = vld [vmem:[#allocation5 + $0x210] sm:$0xff]
        %v720 = vld [vmem:[#allocation5 + $0x218] sm:$0xff]
        %v721 = vld [vmem:[#allocation5 + $0x220] sm:$0xff]
        %v722 = vld [vmem:[#allocation5 + $0x228] sm:$0xff]
        %v723 = vld [vmem:[#allocation5 + $0x230] sm:$0xff]
        %v724 = vld [vmem:[#allocation5 + $0x238] sm:$0xff]
        %v725 = vld [vmem:[#allocation5 + $0x240] sm:$0xff]
        %v726 = vld [vmem:[#allocation5 + $0x248] sm:$0xff]
        %v727 = vld [vmem:[#allocation5 + $0x250] sm:$0xff]
        %v728 = vld [vmem:[#allocation5 + $0x258] sm:$0xff]
        %v729 = vld [vmem:[#allocation5 + $0x260] sm:$0xff]
        %v730 = vld [vmem:[#allocation5 + $0x268] sm:$0xff]
        %v731 = vld [vmem:[#allocation5 + $0x270] sm:$0xff]
        %v732 = vld [vmem:[#allocation5 + $0x278] sm:$0xff]
        %v733 = vld [vmem:[%s6] sm:$0x3]
        %v735 = vlaneseq
        %v736 = vshrl.u32 %v735, 7
        %v737 = vsub.s32 0, %v736
        %v738 = vrot.slane %v733, %v737
        %v739 = vlaneseq
        %v740 = vshrl.u32 %v739, 7
        %v741 = vsub.s32 1, %v740
        %v742 = vrot.slane %v733, %v741
        %v825 = vunpack.c.l.b16 %v653
        %v826 = vunpack.c.h.b16 %v653
        %v827 = vunpack.c.l.b16 %v654
        %v828 = vunpack.c.h.b16 %v654
        %v829 = vunpack.c.l.b16 %v655
        %v830 = vunpack.c.h.b16 %v655
        %v831 = vunpack.c.l.b16 %v656
        %v832 = vunpack.c.h.b16 %v656
        %v833 = vunpack.c.l.b16 %v657
        %v834 = vunpack.c.h.b16 %v657
        %v835 = vunpack.c.l.b16 %v658
        %v836 = vunpack.c.h.b16 %v658
        %v837 = vunpack.c.l.b16 %v659
        %v838 = vunpack.c.h.b16 %v659
        %v839 = vunpack.c.l.b16 %v660
        %v840 = vunpack.c.h.b16 %v660
        %v841 = vunpack.c.l.b16 %v661
        %v842 = vunpack.c.h.b16 %v661
        %v843 = vunpack.c.l.b16 %v662
        %v844 = vunpack.c.h.b16 %v662
        %v845 = vunpack.c.l.b16 %v663
        %v846 = vunpack.c.h.b16 %v663
        %v847 = vunpack.c.l.b16 %v664
        %v848 = vunpack.c.h.b16 %v664
        %v849 = vunpack.c.l.b16 %v665
        %v850 = vunpack.c.h.b16 %v665
        %v851 = vunpack.c.l.b16 %v666
        %v852 = vunpack.c.h.b16 %v666
        %v853 = vunpack.c.l.b16 %v667
        %v854 = vunpack.c.h.b16 %v667
        %v855 = vunpack.c.l.b16 %v668
        %v856 = vunpack.c.h.b16 %v668
        %v857 = vunpack.c.l.b16 %v669
        %v858 = vunpack.c.h.b16 %v669
        %v859 = vunpack.c.l.b16 %v670
        %v860 = vunpack.c.h.b16 %v670
        %v861 = vunpack.c.l.b16 %v671
        %v862 = vunpack.c.h.b16 %v671
        %v863 = vunpack.c.l.b16 %v672
        %v864 = vunpack.c.h.b16 %v672
        %v865 = vunpack.c.l.b16 %v673
        %v866 = vunpack.c.h.b16 %v673
        %v867 = vunpack.c.l.b16 %v674
        %v868 = vunpack.c.h.b16 %v674
        %v869 = vunpack.c.l.b16 %v675
        %v870 = vunpack.c.h.b16 %v675
        %v871 = vunpack.c.l.b16 %v676
        %v872 = vunpack.c.h.b16 %v676
        %v873 = vunpack.c.l.b16 %v677
        %v874 = vunpack.c.h.b16 %v677
        %v875 = vunpack.c.l.b16 %v678
        %v876 = vunpack.c.h.b16 %v678
        %v877 = vunpack.c.l.b16 %v679
        %v878 = vunpack.c.h.b16 %v679
        %v879 = vunpack.c.l.b16 %v680
        %v880 = vunpack.c.h.b16 %v680
        %v881 = vunpack.c.l.b16 %v681
        %v882 = vunpack.c.h.b16 %v681
        %v883 = vunpack.c.l.b16 %v682
        %v884 = vunpack.c.h.b16 %v682
        %v885 = vunpack.c.l.b16 %v683
        %v886 = vunpack.c.h.b16 %v683
        %v887 = vunpack.c.l.b16 %v684
        %v888 = vunpack.c.h.b16 %v684
        %v889 = vunpack.c.l.b16 %v685
        %v890 = vunpack.c.h.b16 %v685
        %v891 = vunpack.c.l.b16 %v686
        %v892 = vunpack.c.h.b16 %v686
        %v893 = vunpack.c.l.b16 %v687
        %v894 = vunpack.c.h.b16 %v687
        %v895 = vunpack.c.l.b16 %v688
        %v896 = vunpack.c.h.b16 %v688
        %v897 = vunpack.c.l.b16 %v689
        %v898 = vunpack.c.h.b16 %v689
        %v899 = vunpack.c.l.b16 %v690
        %v900 = vunpack.c.h.b16 %v690
        %v901 = vunpack.c.l.b16 %v691
        %v902 = vunpack.c.h.b16 %v691
        %v903 = vunpack.c.l.b16 %v692
        %v904 = vunpack.c.h.b16 %v692
        %v905 = vunpack.c.l.b16 %v693
        %v906 = vunpack.c.h.b16 %v693
        %v907 = vunpack.c.l.b16 %v694
        %v908 = vunpack.c.h.b16 %v694
        %v909 = vunpack.c.l.b16 %v695
        %v910 = vunpack.c.h.b16 %v695
        %v911 = vunpack.c.l.b16 %v696
        %v912 = vunpack.c.h.b16 %v696
        %v913 = vunpack.c.l.b16 %v697
        %v914 = vunpack.c.h.b16 %v697
        %v915 = vunpack.c.l.b16 %v698
        %v916 = vunpack.c.h.b16 %v698
        %v917 = vunpack.c.l.b16 %v699
        %v918 = vunpack.c.h.b16 %v699
        %v919 = vunpack.c.l.b16 %v700
        %v920 = vunpack.c.h.b16 %v700
        %v921 = vunpack.c.l.b16 %v701
        %v922 = vunpack.c.h.b16 %v701
        %v923 = vunpack.c.l.b16 %v702
        %v924 = vunpack.c.h.b16 %v702
        %v925 = vunpack.c.l.b16 %v703
        %v926 = vunpack.c.h.b16 %v703
        %v927 = vunpack.c.l.b16 %v704
        %v928 = vunpack.c.h.b16 %v704
        %v929 = vunpack.c.l.b16 %v705
        %v930 = vunpack.c.h.b16 %v705
        %v931 = vunpack.c.l.b16 %v706
        %v932 = vunpack.c.h.b16 %v706
        %v933 = vunpack.c.l.b16 %v707
        %v934 = vunpack.c.h.b16 %v707
        %v935 = vunpack.c.l.b16 %v708
        %v936 = vunpack.c.h.b16 %v708
        %v937 = vunpack.c.l.b16 %v709
        %v938 = vunpack.c.h.b16 %v709
        %v939 = vunpack.c.l.b16 %v710
        %v940 = vunpack.c.h.b16 %v710
        %v941 = vunpack.c.l.b16 %v711
        %v942 = vunpack.c.h.b16 %v711
        %v943 = vunpack.c.l.b16 %v712
        %v944 = vunpack.c.h.b16 %v712
        %v945 = vunpack.c.l.b16 %v713
        %v946 = vunpack.c.h.b16 %v713
        %v947 = vunpack.c.l.b16 %v714
        %v948 = vunpack.c.h.b16 %v714
        %v949 = vunpack.c.l.b16 %v715
        %v950 = vunpack.c.h.b16 %v715
        %v951 = vunpack.c.l.b16 %v716
        %v952 = vunpack.c.h.b16 %v716
        %v953 = vunpack.c.l.b16 %v717
        %v954 = vunpack.c.h.b16 %v717
        %v955 = vunpack.c.l.b16 %v718
        %v956 = vunpack.c.h.b16 %v718
        %v957 = vunpack.c.l.b16 %v719
        %v958 = vunpack.c.h.b16 %v719
        %v959 = vunpack.c.l.b16 %v720
        %v960 = vunpack.c.h.b16 %v720
        %v961 = vunpack.c.l.b16 %v721
        %v962 = vunpack.c.h.b16 %v721
        %v963 = vunpack.c.l.b16 %v722
        %v964 = vunpack.c.h.b16 %v722
        %v965 = vunpack.c.l.b16 %v723
        %v966 = vunpack.c.h.b16 %v723
        %v967 = vunpack.c.l.b16 %v724
        %v968 = vunpack.c.h.b16 %v724
        %v969 = vunpack.c.l.b16 %v725
        %v970 = vunpack.c.h.b16 %v725
        %v971 = vunpack.c.l.b16 %v726
        %v972 = vunpack.c.h.b16 %v726
        %v973 = vunpack.c.l.b16 %v727
        %v974 = vunpack.c.h.b16 %v727
        %v975 = vunpack.c.l.b16 %v728
        %v976 = vunpack.c.h.b16 %v728
        %v977 = vunpack.c.l.b16 %v729
        %v978 = vunpack.c.h.b16 %v729
        %v979 = vunpack.c.l.b16 %v730
        %v980 = vunpack.c.h.b16 %v730
        %v981 = vunpack.c.l.b16 %v731
        %v982 = vunpack.c.h.b16 %v731
        %v983 = vunpack.c.l.b16 %v732
        %v984 = vunpack.c.h.b16 %v732
        %v985 = vpack.c.b16 %v827, %v825
        %v986 = vpack.c.b16 %v828, %v826
        %v987 = vpack.c.b16 %v831, %v829
        %v988 = vpack.c.b16 %v832, %v830
        %v989 = vpack.c.b16 %v835, %v833
        %v990 = vpack.c.b16 %v836, %v834
        %v991 = vpack.c.b16 %v839, %v837
        %v992 = vpack.c.b16 %v840, %v838
        %v993 = vpack.c.b16 %v843, %v841
        %v994 = vpack.c.b16 %v844, %v842
        %v995 = vpack.c.b16 %v847, %v845
        %v996 = vpack.c.b16 %v848, %v846
        %v997 = vpack.c.b16 %v851, %v849
        %v998 = vpack.c.b16 %v852, %v850
        %v999 = vpack.c.b16 %v855, %v853
        %v1000 = vpack.c.b16 %v856, %v854
        %v1001 = vpack.c.b16 %v859, %v857
        %v1002 = vpack.c.b16 %v860, %v858
        %v1003 = vpack.c.b16 %v863, %v861
        %v1004 = vpack.c.b16 %v864, %v862
        %v1005 = vpack.c.b16 %v867, %v865
        %v1006 = vpack.c.b16 %v868, %v866
        %v1007 = vpack.c.b16 %v871, %v869
        %v1008 = vpack.c.b16 %v872, %v870
        %v1009 = vpack.c.b16 %v875, %v873
        %v1010 = vpack.c.b16 %v876, %v874
        %v1011 = vpack.c.b16 %v879, %v877
        %v1012 = vpack.c.b16 %v880, %v878
        %v1013 = vpack.c.b16 %v883, %v881
        %v1014 = vpack.c.b16 %v884, %v882
        %v1015 = vpack.c.b16 %v887, %v885
        %v1016 = vpack.c.b16 %v888, %v886
        %v1017 = vpack.c.b16 %v891, %v889
        %v1018 = vpack.c.b16 %v892, %v890
        %v1019 = vpack.c.b16 %v895, %v893
        %v1020 = vpack.c.b16 %v896, %v894
        %v1021 = vpack.c.b16 %v899, %v897
        %v1022 = vpack.c.b16 %v900, %v898
        %v1023 = vpack.c.b16 %v903, %v901
        %v1024 = vpack.c.b16 %v904, %v902
        %v1025 = vpack.c.b16 %v907, %v905
        %v1026 = vpack.c.b16 %v908, %v906
        %v1027 = vpack.c.b16 %v911, %v909
        %v1028 = vpack.c.b16 %v912, %v910
        %v1029 = vpack.c.b16 %v915, %v913
        %v1030 = vpack.c.b16 %v916, %v914
        %v1031 = vpack.c.b16 %v919, %v917
        %v1032 = vpack.c.b16 %v920, %v918
        %v1033 = vpack.c.b16 %v923, %v921
        %v1034 = vpack.c.b16 %v924, %v922
        %v1035 = vpack.c.b16 %v927, %v925
        %v1036 = vpack.c.b16 %v928, %v926
        %v1037 = vpack.c.b16 %v931, %v929
        %v1038 = vpack.c.b16 %v932, %v930
        %v1039 = vpack.c.b16 %v935, %v933
        %v1040 = vpack.c.b16 %v936, %v934
        %v1041 = vpack.c.b16 %v939, %v937
        %v1042 = vpack.c.b16 %v940, %v938
        %v1043 = vpack.c.b16 %v943, %v941
        %v1044 = vpack.c.b16 %v944, %v942
        %v1045 = vpack.c.b16 %v947, %v945
        %v1046 = vpack.c.b16 %v948, %v946
        %v1047 = vpack.c.b16 %v951, %v949
        %v1048 = vpack.c.b16 %v952, %v950
        %v1049 = vpack.c.b16 %v955, %v953
        %v1050 = vpack.c.b16 %v956, %v954
        %v1051 = vpack.c.b16 %v959, %v957
        %v1052 = vpack.c.b16 %v960, %v958
        %v1053 = vpack.c.b16 %v963, %v961
        %v1054 = vpack.c.b16 %v964, %v962
        %v1055 = vpack.c.b16 %v967, %v965
        %v1056 = vpack.c.b16 %v968, %v966
        %v1057 = vpack.c.b16 %v971, %v969
        %v1058 = vpack.c.b16 %v972, %v970
        %v1059 = vpack.c.b16 %v975, %v973
        %v1060 = vpack.c.b16 %v976, %v974
        %v1061 = vpack.c.b16 %v979, %v977
        %v1062 = vpack.c.b16 %v980, %v978
        %v1063 = vpack.c.b16 %v983, %v981
        %v1064 = vpack.c.b16 %v984, %v982
        %1145 = vmatprep.subr.bf16.mxu0 %v986
        %1146 = vmatpush1.bf16.msra.mxu0 %v985
        %1147 = vmatprep.subr.bf16.mxu0 %v988
        %1148 = vmatpush1.bf16.msra.mxu0 %v987
        %1149 = vmatprep.subr.bf16.mxu0 %v990
        %1150 = vmatpush1.bf16.msra.mxu0 %v989
        %1151 = vmatprep.subr.bf16.mxu0 %v992
        %1152 = vmatpush1.bf16.msra.mxu0 %v991
        %1153 = vmatprep.subr.bf16.mxu0 %v994
        %1154 = vmatpush1.bf16.msra.mxu0 %v993
        %1155 = vmatprep.subr.bf16.mxu0 %v996
        %1156 = vmatpush1.bf16.msra.mxu0 %v995
        %1157 = vmatprep.subr.bf16.mxu0 %v998
        %1158 = vmatpush1.bf16.msra.mxu0 %v997
        %1159 = vmatprep.subr.bf16.mxu0 %v1000
        %1160 = vmatpush1.bf16.msra.mxu0 %v999
        %1161 = vmatprep.subr.bf16.mxu0 %v1002
        %1162 = vmatpush1.bf16.msra.mxu0 %v1001
        %1163 = vmatprep.subr.bf16.mxu0 %v1004
        %1164 = vmatpush1.bf16.msra.mxu0 %v1003
        %1165 = vmatprep.subr.bf16.mxu0 %v1006
        %1166 = vmatpush1.bf16.msra.mxu0 %v1005
        %1167 = vmatprep.subr.bf16.mxu0 %v1008
        %1168 = vmatpush1.bf16.msra.mxu0 %v1007
        %1169 = vmatprep.subr.bf16.mxu0 %v1010
        %1170 = vmatpush1.bf16.msra.mxu0 %v1009
        %1171 = vmatprep.subr.bf16.mxu0 %v1012
        %1172 = vmatpush1.bf16.msra.mxu0 %v1011
        %1173 = vmatprep.subr.bf16.mxu0 %v1014
        %1174 = vmatpush1.bf16.msra.mxu0 %v1013
        %1175 = vmatprep.subr.bf16.mxu0 %v1016
        %1176 = vmatpush1.bf16.msra.mxu0 %v1015
        %1177 = vmatprep.mubr.bf16.mxu0 %v623
        %1178 = vmatmul.mubr.bf16.gmra.mrb[0].mxu0 %v608
        %v1179 = vpop.f32.mrb[0].mxu0
        %v1180 = vadd.f32 %v738, %v1179
        %v1181 = vpop.f32.mrb[0].mxu0
        %v1182 = vadd.f32 %v742, %v1181
        %v1183 = vpop.f32.mrb[0].mxu0
        %v1184 = vadd.f32 %v738, %v1183
        %v1185 = vpop.f32.mrb[0].mxu0
        %v1186 = vadd.f32 %v742, %v1185
        %1187 = vmatprep.mubr.bf16.mxu0 %v626
        %1188 = vmatmul.mubr.bf16.gmra.mrb[0].mxu0 %v609
        %v1189 = vpop.f32.mrb[0].mxu0
        %v1190 = vadd.f32 %v738, %v1189
        %v1191 = vpop.f32.mrb[0].mxu0
        %v1192 = vadd.f32 %v742, %v1191
        %v1193 = vpop.f32.mrb[0].mxu0
        %v1194 = vpop.f32.mrb[0].mxu0
        %1195 = vdwg.mxu0
        %1196 = vmatprep.subr.bf16.mxu0 %v1018
        %1197 = vmatpush1.bf16.msra.mxu0 %v1017
        %1198 = vmatprep.subr.bf16.mxu0 %v1020
        %1199 = vmatpush1.bf16.msra.mxu0 %v1019
        %1200 = vmatprep.subr.bf16.mxu0 %v1022
        %1201 = vmatpush1.bf16.msra.mxu0 %v1021
        %1202 = vmatprep.subr.bf16.mxu0 %v1024
        %1203 = vmatpush1.bf16.msra.mxu0 %v1023
        %1204 = vmatprep.subr.bf16.mxu0 %v1026
        %1205 = vmatpush1.bf16.msra.mxu0 %v1025
        %1206 = vmatprep.subr.bf16.mxu0 %v1028
        %1207 = vmatpush1.bf16.msra.mxu0 %v1027
        %1208 = vmatprep.subr.bf16.mxu0 %v1030
        %1209 = vmatpush1.bf16.msra.mxu0 %v1029
        %1210 = vmatprep.subr.bf16.mxu0 %v1032
        %1211 = vmatpush1.bf16.msra.mxu0 %v1031
        %1212 = vmatprep.subr.bf16.mxu0 %v1034
        %1213 = vmatpush1.bf16.msra.mxu0 %v1033
        %1214 = vmatprep.subr.bf16.mxu0 %v1036
        %1215 = vmatpush1.bf16.msra.mxu0 %v1035
        %1216 = vmatprep.subr.bf16.mxu0 %v1038
        %1217 = vmatpush1.bf16.msra.mxu0 %v1037
        %1218 = vmatprep.subr.bf16.mxu0 %v1040
        %1219 = vmatpush1.bf16.msra.mxu0 %v1039
        %1220 = vmatprep.subr.bf16.mxu0 %v1042
        %1221 = vmatpush1.bf16.msra.mxu0 %v1041
        %1222 = vmatprep.subr.bf16.mxu0 %v1044
        %1223 = vmatpush1.bf16.msra.mxu0 %v1043
        %1224 = vmatprep.subr.bf16.mxu0 %v1046
        %1225 = vmatpush1.bf16.msra.mxu0 %v1045
        %1226 = vmatprep.subr.bf16.mxu0 %v1048
        %1227 = vmatpush1.bf16.msra.mxu0 %v1047
        %1228 = vmatprep.mubr.bf16.mxu0 %v644
        %1229 = vmatmul.mubr.bf16.gmra.mrb[0].mxu0 %v634
        %v1230 = vpop.f32.mrb[0].mxu0
        %v1231 = vadd.f32 %v1180, %v1230
        %v1232 = vpop.f32.mrb[0].mxu0
        %v1233 = vadd.f32 %v1182, %v1232
        %v1234 = vpop.f32.mrb[0].mxu0
        %v1235 = vadd.f32 %v1184, %v1234
        %v1236 = vpop.f32.mrb[0].mxu0
        %v1237 = vadd.f32 %v1186, %v1236
        %1238 = vmatprep.mubr.bf16.mxu0 %v643
        %1239 = vmatmul.mubr.bf16.gmra.mrb[0].mxu0 %v633
        %v1240 = vpop.f32.mrb[0].mxu0
        %v1241 = vadd.f32 %v1190, %v1240
        %v1242 = vpop.f32.mrb[0].mxu0
        %v1243 = vadd.f32 %v1192, %v1242
        %v1244 = vpop.f32.mrb[0].mxu0
        %v1245 = vpop.f32.mrb[0].mxu0
        %1246 = vdwg.mxu0
        %1247 = vmatprep.subr.bf16.mxu0 %v1050
        %1248 = vmatpush1.bf16.msra.mxu0 %v1049
        %1249 = vmatprep.subr.bf16.mxu0 %v1052
        %1250 = vmatpush1.bf16.msra.mxu0 %v1051
        %1251 = vmatprep.subr.bf16.mxu0 %v1054
        %1252 = vmatpush1.bf16.msra.mxu0 %v1053
        %1253 = vmatprep.subr.bf16.mxu0 %v1056
        %1254 = vmatpush1.bf16.msra.mxu0 %v1055
        %1255 = vmatprep.subr.bf16.mxu0 %v1058
        %1256 = vmatpush1.bf16.msra.mxu0 %v1057
        %1257 = vmatprep.subr.bf16.mxu0 %v1060
        %1258 = vmatpush1.bf16.msra.mxu0 %v1059
        %1259 = vmatprep.subr.bf16.mxu0 %v1062
        %1260 = vmatpush1.bf16.msra.mxu0 %v1061
        %1261 = vmatprep.subr.bf16.mxu0 %v1064
        %1262 = vmatpush1.bf16.msra.mxu0 %v1063
        %1263 = vmatprep.subr.bf16.mxu0 0
        %1264 = vmatpush1.bf16.msra.mxu0 0
        %1265 = vmatprep.subr.bf16.mxu0 0
        %1266 = vmatpush1.bf16.msra.mxu0 0
        %1267 = vmatprep.subr.bf16.mxu0 0
        %1268 = vmatpush1.bf16.msra.mxu0 0
        %1269 = vmatprep.subr.bf16.mxu0 0
        %1270 = vmatpush1.bf16.msra.mxu0 0
        %1271 = vmatprep.subr.bf16.mxu0 0
        %1272 = vmatpush1.bf16.msra.mxu0 0
        %1273 = vmatprep.subr.bf16.mxu0 0
        %1274 = vmatpush1.bf16.msra.mxu0 0
        %1275 = vmatprep.subr.bf16.mxu0 0
        %1276 = vmatpush1.bf16.msra.mxu0 0
        %1277 = vmatprep.subr.bf16.mxu0 0
        %1278 = vmatpush1.bf16.msra.mxu0 0
        %1279 = vmatprep.mubr.bf16.mxu0 0
        %1280 = vmatmul.mubr.bf16.gmra.mrb[0].mxu0 %v650
        %v1281 = vpop.f32.mrb[0].mxu0
        %v1282 = vadd.f32 %v1231, %v1281
        %v1283 = vpop.f32.mrb[0].mxu0
        %v1284 = vadd.f32 %v1233, %v1283
        %v1285 = vpop.f32.mrb[0].mxu0
        %v1286 = vadd.f32 %v1235, %v1285
        %v1287 = vpop.f32.mrb[0].mxu0
        %v1288 = vadd.f32 %v1237, %v1287
        %1289 = vmatprep.mubr.bf16.mxu0 0
        %1290 = vmatmul.mubr.bf16.gmra.mrb[0].mxu0 %v649
        %v1291 = vpop.f32.mrb[0].mxu0
        %v1292 = vadd.f32 %v1241, %v1291
        %v1293 = vpop.f32.mrb[0].mxu0
        %v1294 = vadd.f32 %v1243, %v1293
        %v1295 = vpop.f32.mrb[0].mxu0
        %v1296 = vpop.f32.mrb[0].mxu0
        %1297 = vdwg.mxu0
        %v1298 = vxor.u32 %v1282, 2147483648
        %v1299 = vxor.u32 %v1284, 2147483648
        %v1300 = vxor.u32 %v1286, 2147483648
        %v1301 = vxor.u32 %v1288, 2147483648
        %v1302 = vxor.u32 %v1292, 2147483648
        %v1303 = vxor.u32 %v1294, 2147483648
        %v1304 = vmul.f32 %v1298, 1.442695
        %v1305 = vpow.pop %v1304
        %v1306 = vmul.f32 %v1299, 1.442695
        %v1307 = vpow.pop %v1306
        %v1308 = vmul.f32 %v1300, 1.442695
        %v1309 = vpow.pop %v1308
        %v1310 = vmul.f32 %v1301, 1.442695
        %v1311 = vpow.pop %v1310
        %v1312 = vmul.f32 %v1302, 1.442695
        %v1313 = vpow.pop %v1312
        %v1314 = vmul.f32 %v1303, 1.442695
        %v1315 = vpow.pop %v1314
        %v1316 = vadd.f32 %v1305, 1.0
        %v1317 = vadd.f32 %v1307, 1.0
        %v1318 = vadd.f32 %v1309, 1.0
        %v1319 = vadd.f32 %v1311, 1.0
        %v1320 = vadd.f32 %v1313, 1.0
        %v1321 = vadd.f32 %v1315, 1.0
        %v1322 = vrcp.pop %v1316
        %v1323 = vmul.f32 1.0, %v1322
        %v1324 = vrcp.pop %v1317
        %v1325 = vmul.f32 1.0, %v1324
        %v1326 = vrcp.pop %v1318
        %v1327 = vmul.f32 1.0, %v1326
        %v1328 = vrcp.pop %v1319
        %v1329 = vmul.f32 1.0, %v1328
        %v1330 = vrcp.pop %v1320
        %v1331 = vmul.f32 1.0, %v1330
        %v1332 = vrcp.pop %v1321
        %v1333 = vmul.f32 1.0, %v1332
        %v1334 = vmul.f32 %v1323, %v578
        %v1335 = vmul.f32 %v1325, %v578
        %v1336 = vmul.f32 %v1327, %v583
        %v1337 = vmul.f32 %v1329, %v583
        %v1338 = vmul.f32 %v1331, %v588
        %v1339 = vmul.f32 %v1333, %v588
        %v1346 = vrot.slane %v1334, 6
        %v1347 = vrot.slane %v1335, 6
        %v1348 = vrot.slane %v1336, 6
        %v1349 = vsel %vm596, %v1346, %v1348
        %v1350 = vrot.slane %v1337, 6
        %v1351 = vsel %vm596, %v1347, %v1350
        %v1352 = vrot.slane %v1338, 6
        %v1353 = vsel %vm596, %v1348, %v1352
        %v1354 = vrot.slane %v1339, 6
        %v1355 = vsel %vm596, %v1350, %v1354
        %v1364 = vsel %vm596, 0.0, %v1346
        %v1365 = vsel %vm596, 0.0, %v1347
        %v1366 = vsel %vm596, %v1352, 0.0
        %v1367 = vsel %vm596, %v1354, 0.0
        %v1368 = vpack.c.bf16 %v1349, %v1364
        %v1369 = vpack.c.bf16 %v1351, %v1365
        %v1370 = vpack.c.bf16 %v1353, %v1353
        %v1371 = vpack.c.bf16 %v1355, %v1355
        %v1372 = vpack.c.bf16 %v1366, %v1353
        %v1373 = vpack.c.bf16 %v1367, %v1355
        %v1375 = vshrl.u32 %v1368, 16
        %v1377 = vshll.u32 %v1368, 16
        %v1379 = vrot.slane %v1377, 1
        %v1380 = vor.u32 %v1375, %v1379
        %v1382 = vshll.u32 %v1372, 16
        %v1384 = vrot.slane %v1382, 1
        %v1385 = vsel %vm611, %v1380, %v1384
        %v1387 = vshrl.u32 %v1369, 16
        %v1389 = vshll.u32 %v1369, 16
        %v1391 = vrot.slane %v1389, 1
        %v1392 = vor.u32 %v1387, %v1391
        %v1394 = vshll.u32 %v1373, 16
        %v1396 = vrot.slane %v1394, 1
        %v1397 = vsel %vm611, %v1392, %v1396
        %v1398 = vshrl.u32 %v1372, 16
        %v1400 = vor.u32 %v1398, %v1384
        %v1401 = vshrl.u32 %v1373, 16
        %v1403 = vor.u32 %v1401, %v1396
        %v1412 = vrot.slane %v1368, 1
        %v1413 = vrot.slane %v1372, 1
        %v1414 = vsel %vm631, %v1412, %v1413
        %v1415 = vrot.slane %v1369, 1
        %v1416 = vrot.slane %v1373, 1
        %v1417 = vsel %vm631, %v1415, %v1416
        %v1422 = vld [vmem:[#allocation7] sm:$0xf]
        %v1423 = vld [vmem:[#allocation7 + $0x4] sm:$0xf]
        %v1424 = vld [vmem:[#allocation7 + $0x8] sm:$0xf]
        %v1425 = vld [vmem:[#allocation7 + $0xc] sm:$0xf]
        %v1426 = vld [vmem:[#allocation7 + $0x10] sm:$0xf]
        %v1427 = vld [vmem:[#allocation7 + $0x14] sm:$0xf]
        %v1428 = vld [vmem:[#allocation7 + $0x18] sm:$0xf]
        %v1429 = vld [vmem:[#allocation7 + $0x1c] sm:$0xf]
        %v1430 = vld [vmem:[#allocation7 + $0x20] sm:$0xf]
        %v1431 = vld [vmem:[#allocation7 + $0x24] sm:$0xf]
        %v1432 = vld [vmem:[#allocation7 + $0x28] sm:$0xf]
        %v1433 = vld [vmem:[#allocation7 + $0x2c] sm:$0xf]
        %v1434 = vld [vmem:[#allocation7 + $0x30] sm:$0xf]
        %v1435 = vld [vmem:[#allocation7 + $0x34] sm:$0xf]
        %v1436 = vld [vmem:[#allocation7 + $0x38] sm:$0xf]
        %v1437 = vld [vmem:[#allocation7 + $0x3c] sm:$0xf]
        %v1438 = vld [vmem:[#allocation7 + $0x40] sm:$0xf]
        %v1439 = vld [vmem:[#allocation7 + $0x44] sm:$0xf]
        %v1440 = vld [vmem:[#allocation7 + $0x48] sm:$0xf]
        %v1441 = vld [vmem:[#allocation7 + $0x4c] sm:$0xf]
        %v1442 = vld [vmem:[#allocation7 + $0x50] sm:$0xf]
        %v1443 = vld [vmem:[#allocation7 + $0x54] sm:$0xf]
        %v1444 = vld [vmem:[#allocation7 + $0x58] sm:$0xf]
        %v1445 = vld [vmem:[#allocation7 + $0x5c] sm:$0xf]
        %v1446 = vld [vmem:[#allocation7 + $0x60] sm:$0xf]
        %v1447 = vld [vmem:[#allocation7 + $0x64] sm:$0xf]
        %v1448 = vld [vmem:[#allocation7 + $0x68] sm:$0xf]
        %v1449 = vld [vmem:[#allocation7 + $0x6c] sm:$0xf]
        %v1450 = vld [vmem:[#allocation7 + $0x70] sm:$0xf]
        %v1451 = vld [vmem:[#allocation7 + $0x74] sm:$0xf]
        %v1452 = vld [vmem:[#allocation7 + $0x78] sm:$0xf]
        %v1453 = vld [vmem:[#allocation7 + $0x7c] sm:$0xf]
        %v1454 = vld [vmem:[#allocation7 + $0x80] sm:$0xf]
        %v1455 = vld [vmem:[#allocation7 + $0x84] sm:$0xf]
        %v1456 = vld [vmem:[#allocation7 + $0x88] sm:$0xf]
        %v1457 = vld [vmem:[#allocation7 + $0x8c] sm:$0xf]
        %v1458 = vld [vmem:[#allocation7 + $0x90] sm:$0xf]
        %v1459 = vld [vmem:[#allocation7 + $0x94] sm:$0xf]
        %v1460 = vld [vmem:[#allocation7 + $0x98] sm:$0xf]
        %v1461 = vld [vmem:[#allocation7 + $0x9c] sm:$0xf]
        %v1462 = vld [vmem:[#allocation7 + $0xa0] sm:$0xf]
        %v1463 = vld [vmem:[#allocation7 + $0xa4] sm:$0xf]
        %v1464 = vld [vmem:[#allocation7 + $0xa8] sm:$0xf]
        %v1465 = vld [vmem:[#allocation7 + $0xac] sm:$0xf]
        %v1466 = vld [vmem:[#allocation7 + $0xb0] sm:$0xf]
        %v1467 = vld [vmem:[#allocation7 + $0xb4] sm:$0xf]
        %v1468 = vld [vmem:[#allocation7 + $0xb8] sm:$0xf]
        %v1469 = vld [vmem:[#allocation7 + $0xbc] sm:$0xf]
        %v1470 = vld [vmem:[#allocation7 + $0xc0] sm:$0xf]
        %v1471 = vld [vmem:[#allocation7 + $0xc4] sm:$0xf]
        %v1472 = vld [vmem:[#allocation7 + $0xc8] sm:$0xf]
        %v1473 = vld [vmem:[#allocation7 + $0xcc] sm:$0xf]
        %v1474 = vld [vmem:[#allocation7 + $0xd0] sm:$0xf]
        %v1475 = vld [vmem:[#allocation7 + $0xd4] sm:$0xf]
        %v1476 = vld [vmem:[#allocation7 + $0xd8] sm:$0xf]
        %v1477 = vld [vmem:[#allocation7 + $0xdc] sm:$0xf]
        %v1478 = vld [vmem:[#allocation7 + $0xe0] sm:$0xf]
        %v1479 = vld [vmem:[#allocation7 + $0xe4] sm:$0xf]
        %v1480 = vld [vmem:[#allocation7 + $0xe8] sm:$0xf]
        %v1481 = vld [vmem:[#allocation7 + $0xec] sm:$0xf]
        %v1482 = vld [vmem:[#allocation7 + $0xf0] sm:$0xf]
        %v1483 = vld [vmem:[#allocation7 + $0xf4] sm:$0xf]
        %v1484 = vld [vmem:[#allocation7 + $0xf8] sm:$0xf]
        %v1485 = vld [vmem:[#allocation7 + $0xfc] sm:$0xf]
        %v1486 = vld [vmem:[#allocation7 + $0x100] sm:$0xf]
        %v1487 = vld [vmem:[#allocation7 + $0x104] sm:$0xf]
        %v1488 = vld [vmem:[#allocation7 + $0x108] sm:$0xf]
        %v1489 = vld [vmem:[#allocation7 + $0x10c] sm:$0xf]
        %v1490 = vld [vmem:[#allocation7 + $0x110] sm:$0xf]
        %v1491 = vld [vmem:[#allocation7 + $0x114] sm:$0xf]
        %v1492 = vld [vmem:[#allocation7 + $0x118] sm:$0xf]
        %v1493 = vld [vmem:[#allocation7 + $0x11c] sm:$0xf]
        %v1494 = vld [vmem:[#allocation7 + $0x120] sm:$0xf]
        %v1495 = vld [vmem:[#allocation7 + $0x124] sm:$0xf]
        %v1496 = vld [vmem:[#allocation7 + $0x128] sm:$0xf]
        %v1497 = vld [vmem:[#allocation7 + $0x12c] sm:$0xf]
        %v1498 = vld [vmem:[#allocation7 + $0x130] sm:$0xf]
        %v1499 = vld [vmem:[#allocation7 + $0x134] sm:$0xf]
        %v1500 = vld [vmem:[#allocation7 + $0x138] sm:$0xf]
        %v1501 = vld [vmem:[#allocation7 + $0x13c] sm:$0xf]
        %v1502 = vld [vmem:[#allocation7 + $0x140] sm:$0xf]
        %v1503 = vld [vmem:[#allocation7 + $0x144] sm:$0xf]
        %v1504 = vld [vmem:[#allocation7 + $0x148] sm:$0xf]
        %v1505 = vld [vmem:[#allocation7 + $0x14c] sm:$0xf]
        %v1506 = vld [vmem:[#allocation7 + $0x150] sm:$0xf]
        %v1507 = vld [vmem:[#allocation7 + $0x154] sm:$0xf]
        %v1508 = vld [vmem:[#allocation7 + $0x158] sm:$0xf]
        %v1509 = vld [vmem:[#allocation7 + $0x15c] sm:$0xf]
        %v1510 = vld [vmem:[#allocation7 + $0x160] sm:$0xf]
        %v1511 = vld [vmem:[#allocation7 + $0x164] sm:$0xf]
        %v1512 = vld [vmem:[#allocation7 + $0x168] sm:$0xf]
        %v1513 = vld [vmem:[#allocation7 + $0x16c] sm:$0xf]
        %v1514 = vld [vmem:[#allocation7 + $0x170] sm:$0xf]
        %v1515 = vld [vmem:[#allocation7 + $0x174] sm:$0xf]
        %v1516 = vld [vmem:[#allocation7 + $0x178] sm:$0xf]
        %v1517 = vld [vmem:[#allocation7 + $0x17c] sm:$0xf]
        %v1518 = vld [vmem:[%s8] sm:$0x1]
        %v1520 = vlaneseq
        %v1521 = vshrl.u32 %v1520, 7
        %v1522 = vsub.s32 0, %v1521
        %v1523 = vrot.slane %v1518, %v1522
        %v1621 = vunpack.c.l.b16 %v1422
        %v1622 = vunpack.c.l.b16 %v1423
        %v1623 = vunpack.c.l.b16 %v1424
        %v1624 = vunpack.c.l.b16 %v1425
        %v1625 = vunpack.c.l.b16 %v1426
        %v1626 = vunpack.c.l.b16 %v1427
        %v1627 = vunpack.c.l.b16 %v1428
        %v1628 = vunpack.c.l.b16 %v1429
        %v1629 = vunpack.c.l.b16 %v1430
        %v1630 = vunpack.c.l.b16 %v1431
        %v1631 = vunpack.c.l.b16 %v1432
        %v1632 = vunpack.c.l.b16 %v1433
        %v1633 = vunpack.c.l.b16 %v1434
        %v1634 = vunpack.c.l.b16 %v1435
        %v1635 = vunpack.c.l.b16 %v1436
        %v1636 = vunpack.c.l.b16 %v1437
        %v1637 = vunpack.c.l.b16 %v1438
        %v1638 = vunpack.c.l.b16 %v1439
        %v1639 = vunpack.c.l.b16 %v1440
        %v1640 = vunpack.c.l.b16 %v1441
        %v1641 = vunpack.c.l.b16 %v1442
        %v1642 = vunpack.c.l.b16 %v1443
        %v1643 = vunpack.c.l.b16 %v1444
        %v1644 = vunpack.c.l.b16 %v1445
        %v1645 = vunpack.c.l.b16 %v1446
        %v1646 = vunpack.c.l.b16 %v1447
        %v1647 = vunpack.c.l.b16 %v1448
        %v1648 = vunpack.c.l.b16 %v1449
        %v1649 = vunpack.c.l.b16 %v1450
        %v1650 = vunpack.c.l.b16 %v1451
        %v1651 = vunpack.c.l.b16 %v1452
        %v1652 = vunpack.c.l.b16 %v1453
        %v1653 = vunpack.c.l.b16 %v1454
        %v1654 = vunpack.c.l.b16 %v1455
        %v1655 = vunpack.c.l.b16 %v1456
        %v1656 = vunpack.c.l.b16 %v1457
        %v1657 = vunpack.c.l.b16 %v1458
        %v1658 = vunpack.c.l.b16 %v1459
        %v1659 = vunpack.c.l.b16 %v1460
        %v1660 = vunpack.c.l.b16 %v1461
        %v1661 = vunpack.c.l.b16 %v1462
        %v1662 = vunpack.c.l.b16 %v1463
        %v1663 = vunpack.c.l.b16 %v1464
        %v1664 = vunpack.c.l.b16 %v1465
        %v1665 = vunpack.c.l.b16 %v1466
        %v1666 = vunpack.c.l.b16 %v1467
        %v1667 = vunpack.c.l.b16 %v1468
        %v1668 = vunpack.c.l.b16 %v1469
        %v1669 = vunpack.c.l.b16 %v1470
        %v1670 = vunpack.c.l.b16 %v1471
        %v1671 = vunpack.c.l.b16 %v1472
        %v1672 = vunpack.c.l.b16 %v1473
        %v1673 = vunpack.c.l.b16 %v1474
        %v1674 = vunpack.c.l.b16 %v1475
        %v1675 = vunpack.c.l.b16 %v1476
        %v1676 = vunpack.c.l.b16 %v1477
        %v1677 = vunpack.c.l.b16 %v1478
        %v1678 = vunpack.c.l.b16 %v1479
        %v1679 = vunpack.c.l.b16 %v1480
        %v1680 = vunpack.c.l.b16 %v1481
        %v1681 = vunpack.c.l.b16 %v1482
        %v1682 = vunpack.c.l.b16 %v1483
        %v1683 = vunpack.c.l.b16 %v1484
        %v1684 = vunpack.c.l.b16 %v1485
        %v1685 = vunpack.c.l.b16 %v1486
        %v1686 = vunpack.c.l.b16 %v1487
        %v1687 = vunpack.c.l.b16 %v1488
        %v1688 = vunpack.c.l.b16 %v1489
        %v1689 = vunpack.c.l.b16 %v1490
        %v1690 = vunpack.c.l.b16 %v1491
        %v1691 = vunpack.c.l.b16 %v1492
        %v1692 = vunpack.c.l.b16 %v1493
        %v1693 = vunpack.c.l.b16 %v1494
        %v1694 = vunpack.c.l.b16 %v1495
        %v1695 = vunpack.c.l.b16 %v1496
        %v1696 = vunpack.c.l.b16 %v1497
        %v1697 = vunpack.c.l.b16 %v1498
        %v1698 = vunpack.c.l.b16 %v1499
        %v1699 = vunpack.c.l.b16 %v1500
        %v1700 = vunpack.c.l.b16 %v1501
        %v1701 = vunpack.c.l.b16 %v1502
        %v1702 = vunpack.c.l.b16 %v1503
        %v1703 = vunpack.c.l.b16 %v1504
        %v1704 = vunpack.c.l.b16 %v1505
        %v1705 = vunpack.c.l.b16 %v1506
        %v1706 = vunpack.c.l.b16 %v1507
        %v1707 = vunpack.c.l.b16 %v1508
        %v1708 = vunpack.c.l.b16 %v1509
        %v1709 = vunpack.c.l.b16 %v1510
        %v1710 = vunpack.c.l.b16 %v1511
        %v1711 = vunpack.c.l.b16 %v1512
        %v1712 = vunpack.c.l.b16 %v1513
        %v1713 = vunpack.c.l.b16 %v1514
        %v1714 = vunpack.c.l.b16 %v1515
        %v1715 = vunpack.c.l.b16 %v1516
        %v1716 = vunpack.c.l.b16 %v1517
        %v1717 = vpack.c.b16 %v1622, %v1621
        %v1718 = vpack.c.b16 %v1624, %v1623
        %v1719 = vpack.c.b16 %v1626, %v1625
        %v1720 = vpack.c.b16 %v1628, %v1627
        %v1721 = vpack.c.b16 %v1630, %v1629
        %v1722 = vpack.c.b16 %v1632, %v1631
        %v1723 = vpack.c.b16 %v1634, %v1633
        %v1724 = vpack.c.b16 %v1636, %v1635
        %v1725 = vpack.c.b16 %v1638, %v1637
        %v1726 = vpack.c.b16 %v1640, %v1639
        %v1727 = vpack.c.b16 %v1642, %v1641
        %v1728 = vpack.c.b16 %v1644, %v1643
        %v1729 = vpack.c.b16 %v1646, %v1645
        %v1730 = vpack.c.b16 %v1648, %v1647
        %v1731 = vpack.c.b16 %v1650, %v1649
        %v1732 = vpack.c.b16 %v1652, %v1651
        %v1733 = vpack.c.b16 %v1654, %v1653
        %v1734 = vpack.c.b16 %v1656, %v1655
        %v1735 = vpack.c.b16 %v1658, %v1657
        %v1736 = vpack.c.b16 %v1660, %v1659
        %v1737 = vpack.c.b16 %v1662, %v1661
        %v1738 = vpack.c.b16 %v1664, %v1663
        %v1739 = vpack.c.b16 %v1666, %v1665
        %v1740 = vpack.c.b16 %v1668, %v1667
        %v1741 = vpack.c.b16 %v1670, %v1669
        %v1742 = vpack.c.b16 %v1672, %v1671
        %v1743 = vpack.c.b16 %v1674, %v1673
        %v1744 = vpack.c.b16 %v1676, %v1675
        %v1745 = vpack.c.b16 %v1678, %v1677
        %v1746 = vpack.c.b16 %v1680, %v1679
        %v1747 = vpack.c.b16 %v1682, %v1681
        %v1748 = vpack.c.b16 %v1684, %v1683
        %v1749 = vpack.c.b16 %v1686, %v1685
        %v1750 = vpack.c.b16 %v1688, %v1687
        %v1751 = vpack.c.b16 %v1690, %v1689
        %v1752 = vpack.c.b16 %v1692, %v1691
        %v1753 = vpack.c.b16 %v1694, %v1693
        %v1754 = vpack.c.b16 %v1696, %v1695
        %v1755 = vpack.c.b16 %v1698, %v1697
        %v1756 = vpack.c.b16 %v1700, %v1699
        %v1757 = vpack.c.b16 %v1702, %v1701
        %v1758 = vpack.c.b16 %v1704, %v1703
        %v1759 = vpack.c.b16 %v1706, %v1705
        %v1760 = vpack.c.b16 %v1708, %v1707
        %v1761 = vpack.c.b16 %v1710, %v1709
        %v1762 = vpack.c.b16 %v1712, %v1711
        %v1763 = vpack.c.b16 %v1714, %v1713
        %v1764 = vpack.c.b16 %v1716, %v1715
        %1813 = vmatprep.subr.bf16.mxu0 0
        %1814 = vmatpush1.bf16.msra.mxu0 %v1717
        %1815 = vmatprep.subr.bf16.mxu0 0
        %1816 = vmatpush1.bf16.msra.mxu0 %v1718
        %1817 = vmatprep.subr.bf16.mxu0 0
        %1818 = vmatpush1.bf16.msra.mxu0 %v1719
        %1819 = vmatprep.subr.bf16.mxu0 0
        %1820 = vmatpush1.bf16.msra.mxu0 %v1720
        %1821 = vmatprep.subr.bf16.mxu0 0
        %1822 = vmatpush1.bf16.msra.mxu0 %v1721
        %1823 = vmatprep.subr.bf16.mxu0 0
        %1824 = vmatpush1.bf16.msra.mxu0 %v1722
        %1825 = vmatprep.subr.bf16.mxu0 0
        %1826 = vmatpush1.bf16.msra.mxu0 %v1723
        %1827 = vmatprep.subr.bf16.mxu0 0
        %1828 = vmatpush1.bf16.msra.mxu0 %v1724
        %1829 = vmatprep.subr.bf16.mxu0 0
        %1830 = vmatpush1.bf16.msra.mxu0 %v1725
        %1831 = vmatprep.subr.bf16.mxu0 0
        %1832 = vmatpush1.bf16.msra.mxu0 %v1726
        %1833 = vmatprep.subr.bf16.mxu0 0
        %1834 = vmatpush1.bf16.msra.mxu0 %v1727
        %1835 = vmatprep.subr.bf16.mxu0 0
        %1836 = vmatpush1.bf16.msra.mxu0 %v1728
        %1837 = vmatprep.subr.bf16.mxu0 0
        %1838 = vmatpush1.bf16.msra.mxu0 %v1729
        %1839 = vmatprep.subr.bf16.mxu0 0
        %1840 = vmatpush1.bf16.msra.mxu0 %v1730
        %1841 = vmatprep.subr.bf16.mxu0 0
        %1842 = vmatpush1.bf16.msra.mxu0 %v1731
        %1843 = vmatprep.subr.bf16.mxu0 0
        %1844 = vmatpush1.bf16.msra.mxu0 %v1732
        %1845 = vmatprep.mubr.bf16.mxu0 %v1369
        %1846 = vmatmul.mubr.bf16.gmra.mrb[0].mxu0 %v1368
        %v1847 = vpop.f32.mrb[0].mxu0
        %v1848 = vadd.f32 %v1523, %v1847
        %v1849 = vpop.f32.mrb[0].mxu0
        %v1850 = vpop.f32.mrb[0].mxu0
        %v1851 = vadd.f32 %v1523, %v1850
        %v1852 = vpop.f32.mrb[0].mxu0
        %1853 = vmatprep.mubr.bf16.mxu0 %v1371
        %1854 = vmatmul.mubr.bf16.gmra.mrb[0].mxu0 %v1370
        %v1855 = vpop.f32.mrb[0].mxu0
        %v1856 = vadd.f32 %v1523, %v1855
        %v1857 = vpop.f32.mrb[0].mxu0
        %v1858 = vpop.f32.mrb[0].mxu0
        %v1859 = vpop.f32.mrb[0].mxu0
        %1860 = vdwg.mxu0
        %1861 = vmatprep.subr.bf16.mxu0 0
        %1862 = vmatpush1.bf16.msra.mxu0 %v1733
        %1863 = vmatprep.subr.bf16.mxu0 0
        %1864 = vmatpush1.bf16.msra.mxu0 %v1734
        %1865 = vmatprep.subr.bf16.mxu0 0
        %1866 = vmatpush1.bf16.msra.mxu0 %v1735
        %1867 = vmatprep.subr.bf16.mxu0 0
        %1868 = vmatpush1.bf16.msra.mxu0 %v1736
        %1869 = vmatprep.subr.bf16.mxu0 0
        %1870 = vmatpush1.bf16.msra.mxu0 %v1737
        %1871 = vmatprep.subr.bf16.mxu0 0
        %1872 = vmatpush1.bf16.msra.mxu0 %v1738
        %1873 = vmatprep.subr.bf16.mxu0 0
        %1874 = vmatpush1.bf16.msra.mxu0 %v1739
        %1875 = vmatprep.subr.bf16.mxu0 0
        %1876 = vmatpush1.bf16.msra.mxu0 %v1740
        %1877 = vmatprep.subr.bf16.mxu0 0
        %1878 = vmatpush1.bf16.msra.mxu0 %v1741
        %1879 = vmatprep.subr.bf16.mxu0 0
        %1880 = vmatpush1.bf16.msra.mxu0 %v1742
        %1881 = vmatprep.subr.bf16.mxu0 0
        %1882 = vmatpush1.bf16.msra.mxu0 %v1743
        %1883 = vmatprep.subr.bf16.mxu0 0
        %1884 = vmatpush1.bf16.msra.mxu0 %v1744
        %1885 = vmatprep.subr.bf16.mxu0 0
        %1886 = vmatpush1.bf16.msra.mxu0 %v1745
        %1887 = vmatprep.subr.bf16.mxu0 0
        %1888 = vmatpush1.bf16.msra.mxu0 %v1746
        %1889 = vmatprep.subr.bf16.mxu0 0
        %1890 = vmatpush1.bf16.msra.mxu0 %v1747
        %1891 = vmatprep.subr.bf16.mxu0 0
        %1892 = vmatpush1.bf16.msra.mxu0 %v1748
        %1893 = vmatprep.mubr.bf16.mxu0 %v1397
        %1894 = vmatmul.mubr.bf16.gmra.mrb[0].mxu0 %v1385
        %v1895 = vpop.f32.mrb[0].mxu0
        %v1896 = vadd.f32 %v1848, %v1895
        %v1897 = vpop.f32.mrb[0].mxu0
        %v1898 = vpop.f32.mrb[0].mxu0
        %v1899 = vadd.f32 %v1851, %v1898
        %v1900 = vpop.f32.mrb[0].mxu0
        %1901 = vmatprep.mubr.bf16.mxu0 %v1403
        %1902 = vmatmul.mubr.bf16.gmra.mrb[0].mxu0 %v1400
        %v1903 = vpop.f32.mrb[0].mxu0
        %v1904 = vadd.f32 %v1856, %v1903
        %v1905 = vpop.f32.mrb[0].mxu0
        %v1906 = vpop.f32.mrb[0].mxu0
        %v1907 = vpop.f32.mrb[0].mxu0
        %1908 = vdwg.mxu0
        %1909 = vmatprep.subr.bf16.mxu0 0
        %1910 = vmatpush1.bf16.msra.mxu0 %v1749
        %1911 = vmatprep.subr.bf16.mxu0 0
        %1912 = vmatpush1.bf16.msra.mxu0 %v1750
        %1913 = vmatprep.subr.bf16.mxu0 0
        %1914 = vmatpush1.bf16.msra.mxu0 %v1751
        %1915 = vmatprep.subr.bf16.mxu0 0
        %1916 = vmatpush1.bf16.msra.mxu0 %v1752
        %1917 = vmatprep.subr.bf16.mxu0 0
        %1918 = vmatpush1.bf16.msra.mxu0 %v1753
        %1919 = vmatprep.subr.bf16.mxu0 0
        %1920 = vmatpush1.bf16.msra.mxu0 %v1754
        %1921 = vmatprep.subr.bf16.mxu0 0
        %1922 = vmatpush1.bf16.msra.mxu0 %v1755
        %1923 = vmatprep.subr.bf16.mxu0 0
        %1924 = vmatpush1.bf16.msra.mxu0 %v1756
        %1925 = vmatprep.subr.bf16.mxu0 0
        %1926 = vmatpush1.bf16.msra.mxu0 %v1757
        %1927 = vmatprep.subr.bf16.mxu0 0
        %1928 = vmatpush1.bf16.msra.mxu0 %v1758
        %1929 = vmatprep.subr.bf16.mxu0 0
        %1930 = vmatpush1.bf16.msra.mxu0 %v1759
        %1931 = vmatprep.subr.bf16.mxu0 0
        %1932 = vmatpush1.bf16.msra.mxu0 %v1760
        %1933 = vmatprep.subr.bf16.mxu0 0
        %1934 = vmatpush1.bf16.msra.mxu0 %v1761
        %1935 = vmatprep.subr.bf16.mxu0 0
        %1936 = vmatpush1.bf16.msra.mxu0 %v1762
        %1937 = vmatprep.subr.bf16.mxu0 0
        %1938 = vmatpush1.bf16.msra.mxu0 %v1763
        %1939 = vmatprep.subr.bf16.mxu0 0
        %1940 = vmatpush1.bf16.msra.mxu0 %v1764
        %1941 = vmatprep.mubr.bf16.mxu0 %v1417
        %1942 = vmatmul.mubr.bf16.gmra.mrb[0].mxu0 %v1414
        %v1943 = vpop.f32.mrb[0].mxu0
        %v1944 = vadd.f32 %v1896, %v1943
        %v1945 = vpop.f32.mrb[0].mxu0
        %v1946 = vpop.f32.mrb[0].mxu0
        %v1947 = vadd.f32 %v1899, %v1946
        %v1948 = vpop.f32.mrb[0].mxu0
        %1949 = vmatprep.mubr.bf16.mxu0 %v1416
        %1950 = vmatmul.mubr.bf16.gmra.mrb[0].mxu0 %v1413
        %v1951 = vpop.f32.mrb[0].mxu0
        %v1952 = vadd.f32 %v1904, %v1951
        %v1953 = vpop.f32.mrb[0].mxu0
        %v1954 = vpop.f32.mrb[0].mxu0
        %v1955 = vpop.f32.mrb[0].mxu0
        %1956 = vdwg.mxu0
        %v1957 = vxor.u32 %v1944, 2147483648
        %v1958 = vxor.u32 %v1947, 2147483648
        %v1959 = vxor.u32 %v1952, 2147483648
        %v1960 = vmul.f32 %v1957, 1.442695
        %v1961 = vpow.pop %v1960
        %v1962 = vmul.f32 %v1958, 1.442695
        %v1963 = vpow.pop %v1962
        %v1964 = vmul.f32 %v1959, 1.442695
        %v1965 = vpow.pop %v1964
        %v1966 = vadd.f32 %v1961, 1.0
        %v1967 = vadd.f32 %v1963, 1.0
        %v1968 = vadd.f32 %v1965, 1.0
        %v1969 = vrcp.pop %v1966
        %v1970 = vmul.f32 1.0, %v1969
        %v1971 = vrcp.pop %v1967
        %v1972 = vmul.f32 1.0, %v1971
        %v1973 = vrcp.pop %v1968
        %v1974 = vmul.f32 1.0, %v1973
        %v1975 = vld [vmem:[%s2] sm:$0x1]
        %vm1976 = vcmask 195584
        %v1978 = vsel %vm1976, %v1975, 0
        %1980 = vmatprep.subr.mxu0 0.0
        %1981 = vmatpush1.msra.mxu0 %v1970
        %1982 = vmatprep.subr.mxu0 0.0
        %1983 = vmatpush1.msra.mxu0 %v1972
        %1984 = vmatprep.subr.mxu0 0.0
        %1985 = vmatpush1.msra.mxu0 %v1974
        %1986 = vmatprep.subr.mxu0 0.0
        %1987 = vmatpush1.msra.mxu0 0.0
        %1988 = vmatprep.subr.mxu0 0.0
        %1989 = vmatpush1.msra.mxu0 0.0
        %1990 = vmatprep.subr.mxu0 0.0
        %1991 = vmatpush1.msra.mxu0 0.0
        %1992 = vmatprep.subr.mxu0 0.0
        %1993 = vmatpush1.msra.mxu0 0.0
        %1994 = vmatprep.subr.mxu0 0.0
        %1995 = vmatpush1.msra.mxu0 0.0
        %1996 = vmatprep.subr.mxu0 0.0
        %1997 = vmatpush1.msra.mxu0 0.0
        %1998 = vmatprep.subr.mxu0 0.0
        %1999 = vmatpush1.msra.mxu0 0.0
        %2000 = vmatprep.subr.mxu0 0.0
        %2001 = vmatpush1.msra.mxu0 0.0
        %2002 = vmatprep.subr.mxu0 0.0
        %2003 = vmatpush1.msra.mxu0 0.0
        %2004 = vmatprep.subr.mxu0 0.0
        %2005 = vmatpush1.msra.mxu0 0.0
        %2006 = vmatprep.subr.mxu0 0.0
        %2007 = vmatpush1.msra.mxu0 0.0
        %2008 = vmatprep.subr.mxu0 0.0
        %2009 = vmatpush1.msra.mxu0 0.0
        %2010 = vmatprep.subr.mxu0 0.0
        %2011 = vmatpush1.msra.mxu0 0.0
        %2012 = vmatprep.subr.mxu0 0.0
        %2013 = vmatpush1.msra.mxu0 0.0
        %2014 = vmatprep.subr.mxu0 0.0
        %2015 = vmatpush1.msra.mxu0 0.0
        %2016 = vmatprep.subr.mxu0 0.0
        %2017 = vmatpush1.msra.mxu0 0.0
        %2018 = vmatprep.subr.mxu0 0.0
        %2019 = vmatpush1.msra.mxu0 0.0
        %2020 = vmatprep.subr.mxu0 0.0
        %2021 = vmatpush1.msra.mxu0 0.0
        %2022 = vmatprep.subr.mxu0 0.0
        %2023 = vmatpush1.msra.mxu0 0.0
        %2024 = vmatprep.subr.mxu0 0.0
        %2025 = vmatpush1.msra.mxu0 0.0
        %2026 = vmatprep.subr.mxu0 0.0
        %2027 = vmatpush1.msra.mxu0 0.0
        %2028 = vmatprep.subr.mxu0 0.0
        %2029 = vmatpush1.msra.mxu0 0.0
        %2030 = vmatprep.subr.mxu0 0.0
        %2031 = vmatpush1.msra.mxu0 0.0
        %2032 = vmatprep.subr.mxu0 0.0
        %2033 = vmatpush1.msra.mxu0 0.0
        %2034 = vmatprep.subr.mxu0 0.0
        %2035 = vmatpush1.msra.mxu0 0.0
        %2036 = vmatprep.subr.mxu0 0.0
        %2037 = vmatpush1.msra.mxu0 0.0
        %2038 = vmatprep.subr.mxu0 0.0
        %2039 = vmatpush1.msra.mxu0 0.0
        %2040 = vmatprep.subr.mxu0 0.0
        %2041 = vmatpush1.msra.mxu0 0.0
        %2042 = vmatprep.subr.mxu0 0.0
        %2043 = vmatpush1.msra.mxu0 0.0
        %2044 = vmatprep.mubr.f32.mxu0 0.0
        %2045 = vmatmul.mubr.f32.gmra.mrb[0].mxu0 %v1978
        %v2046 = vpop.f32.mrb[0].mxu0
        %v2047 = vadd.f32 0.0, %v2046
        %v2048 = vpop.f32.mrb[0].mxu0
        %2049 = vdwg.mxu0
        %v2050 = vpack.c.bf16 %v2047, %v2047
        %v2051 = vld [vmem:[#allocation8] sm:$0xf]
        %v2052 = vld [vmem:[#allocation8 + $0x4] sm:$0xf]
        %v2053 = vld [vmem:[#allocation8 + $0x8] sm:$0xf]
        %v2054 = vld [vmem:[#allocation8 + $0xc] sm:$0xf]
        %v2055 = vld [vmem:[#allocation8 + $0x10] sm:$0xf]
        %v2056 = vld [vmem:[#allocation8 + $0x14] sm:$0xf]
        %v2057 = vld [vmem:[#allocation8 + $0x18] sm:$0xf]
        %v2058 = vld [vmem:[#allocation8 + $0x1c] sm:$0xf]
        %v2059 = vld [vmem:[#allocation8 + $0x20] sm:$0xf]
        %v2060 = vld [vmem:[#allocation8 + $0x24] sm:$0xf]
        %v2061 = vld [vmem:[#allocation8 + $0x28] sm:$0xf]
        %v2062 = vld [vmem:[#allocation8 + $0x2c] sm:$0xf]
        %v2063 = vld [vmem:[#allocation8 + $0x30] sm:$0xf]
        %v2064 = vld [vmem:[#allocation8 + $0x34] sm:$0xf]
        %v2065 = vld [vmem:[#allocation8 + $0x38] sm:$0xf]
        %v2066 = vld [vmem:[#allocation8 + $0x3c] sm:$0xf]
        %v2067 = vld [vmem:[%s10] sm:$0x1]
        %v2084 = vunpack.c.l.b16 %v2051
        %v2085 = vunpack.c.l.b16 %v2052
        %v2086 = vunpack.c.l.b16 %v2053
        %v2087 = vunpack.c.l.b16 %v2054
        %v2088 = vunpack.c.l.b16 %v2055
        %v2089 = vunpack.c.l.b16 %v2056
        %v2090 = vunpack.c.l.b16 %v2057
        %v2091 = vunpack.c.l.b16 %v2058
        %v2092 = vunpack.c.l.b16 %v2059
        %v2093 = vunpack.c.l.b16 %v2060
        %v2094 = vunpack.c.l.b16 %v2061
        %v2095 = vunpack.c.l.b16 %v2062
        %v2096 = vunpack.c.l.b16 %v2063
        %v2097 = vunpack.c.l.b16 %v2064
        %v2098 = vunpack.c.l.b16 %v2065
        %v2099 = vunpack.c.l.b16 %v2066
        %v2100 = vpack.c.b16 %v2085, %v2084
        %v2101 = vpack.c.b16 %v2087, %v2086
        %v2102 = vpack.c.b16 %v2089, %v2088
        %v2103 = vpack.c.b16 %v2091, %v2090
        %v2104 = vpack.c.b16 %v2093, %v2092
        %v2105 = vpack.c.b16 %v2095, %v2094
        %v2106 = vpack.c.b16 %v2097, %v2096
        %v2107 = vpack.c.b16 %v2099, %v2098
        %2116 = vmatprep.subr.bf16.mxu0 0
        %2117 = vmatpush1.bf16.msra.mxu0 %v2100
        %2118 = vmatprep.subr.bf16.mxu0 0
        %2119 = vmatpush1.bf16.msra.mxu0 %v2101
        %2120 = vmatprep.subr.bf16.mxu0 0
        %2121 = vmatpush1.bf16.msra.mxu0 %v2102
        %2122 = vmatprep.subr.bf16.mxu0 0
        %2123 = vmatpush1.bf16.msra.mxu0 %v2103
        %2124 = vmatprep.subr.bf16.mxu0 0
        %2125 = vmatpush1.bf16.msra.mxu0 %v2104
        %2126 = vmatprep.subr.bf16.mxu0 0
        %2127 = vmatpush1.bf16.msra.mxu0 %v2105
        %2128 = vmatprep.subr.bf16.mxu0 0
        %2129 = vmatpush1.bf16.msra.mxu0 %v2106
        %2130 = vmatprep.subr.bf16.mxu0 0
        %2131 = vmatpush1.bf16.msra.mxu0 %v2107
        %2132 = vmatprep.subr.bf16.mxu0 0
        %2133 = vmatpush1.bf16.msra.mxu0 0
        %2134 = vmatprep.subr.bf16.mxu0 0
        %2135 = vmatpush1.bf16.msra.mxu0 0
        %2136 = vmatprep.subr.bf16.mxu0 0
        %2137 = vmatpush1.bf16.msra.mxu0 0
        %2138 = vmatprep.subr.bf16.mxu0 0
        %2139 = vmatpush1.bf16.msra.mxu0 0
        %2140 = vmatprep.subr.bf16.mxu0 0
        %2141 = vmatpush1.bf16.msra.mxu0 0
        %2142 = vmatprep.subr.bf16.mxu0 0
        %2143 = vmatpush1.bf16.msra.mxu0 0
        %2144 = vmatprep.subr.bf16.mxu0 0
        %2145 = vmatpush1.bf16.msra.mxu0 0
        %2146 = vmatprep.subr.bf16.mxu0 0
        %2147 = vmatpush1.bf16.msra.mxu0 0
        %2148 = vmatprep.mubr.bf16.mxu0 0
        %2149 = vmatmul.mubr.bf16.gmra.mrb[0].mxu0 %v2050
        %v2150 = vpop.f32.mrb[0].mxu0
        %v2151 = vadd.f32 %v2067, %v2150
        %v2152 = vpop.f32.mrb[0].mxu0
        %v2153 = vpop.f32.mrb[0].mxu0
        %v2154 = vpop.f32.mrb[0].mxu0
        %2155 = vdwg.mxu0
        %2156 = vst [vmem:[%s447] sm:$0x1] %v2151
        %s2157 = sand.u32 %s274, 1
        %s2158 = scalar_lea.sflag [#allocation4], %s2157
        %s2159 = sand.u32 %s274, 1
        %s2160 = scalar_lea.vmem [#allocation10], %s2159
        // Predicated region
        $region81: #{tpu_custom_call.1} parent=63 // pred_check
          %p2161 = pneg %p284
        $region82: #{tpu_custom_call.1} parent=63 // pred_check_branch
          %2163 = sbr.rel (%p2161) target = $region84
        $region83: #{tpu_custom_call.1} parent=63 // pred_region
          %s2165 = ssub.s32 16, 16
          %2166 = vsyncadd %s2158, %s2165
          %s2167 = smul.addr %s30, 16
          %s2168 = scalar_lea.hbm %s11, %s2167
          %s2170 = sshll.u32 %s2160, 4
          %s2171 = int_to_ptr.vmem [resolvable:$true] %s2170
          %2173 = dma.vmem_to_hbm [thread:$0]  %s2171, 16, %s2168, %s2158
        $region84: #{tpu_custom_call.1} parent=63 // pred_fallthru
          _
      $region64: #{tpu_custom_call.1} parent=5 // pred_fallthru
        _
      %p2174 = scmp.le.s32.totalorder 2, %s25
      // Predicated region
      $region85: #{tpu_custom_call.1} parent=5 // pred_check
        %p2175 = pneg %p2174
      $region86: #{tpu_custom_call.1} parent=5 // pred_check_branch
        %2177 = sbr.rel (%p2175) target = $region88
      $region87: #{tpu_custom_call.1} parent=5 // pred_region
        %s2178 = ssub.s32 %s25, 2
        // Predicated region
        $region89: #{tpu_custom_call.1} parent=87 // pred_check
          %p2179 = pneg %p290
        $region90: #{tpu_custom_call.1} parent=87 // pred_check_branch
          %2181 = sbr.rel (%p2179) target = $region92
        $region91: #{tpu_custom_call.1} parent=87 // pred_region
          %s2182 = sand.u32 %s275, 1
          %s2183 = scalar_lea.sflag [#allocation4], %s2182
          %s2184 = sand.u32 %s275, 1
          %s2185 = scalar_lea.vmem [#allocation10], %s2184
          %2186 = dma.done %s2183, 16
        $region92: #{tpu_custom_call.1} parent=87 // pred_fallthru
          _
      $region88: #{tpu_custom_call.1} parent=5 // pred_fallthru
        _
    $region6: #{tpu_custom_call.1} parent=1 // loop_footer
      %s29 = sadd.s32 1, %s25
    $region7: #{tpu_custom_call.1} parent=1 // loop_footer_branch
      %24 = sbr.rel target = $region3
    $region8: #{tpu_custom_call.1} parent=1 // loop_exit
      _
    %2187 = vsyncpa [#allocation3], 1
    %s2188 = scalar_lea.sflag [#allocation3], 1
    %2189 = vsyncpa %s2188, 1
    %2190 = vsyncpa [#allocation6], 1
    %2191 = vsyncpa [#allocation9], 1
    %2192 = vsyncpa [#allocation4], 1
    %s2193 = scalar_lea.sflag [#allocation4], 1
    %2194 = vsyncpa %s2193, 1

</llo_original>
